<compile_context>
chip_gen: v6e
topology: v6e:2x2x1
jax: 0.10.0
libtpu: 0.0.40
codegen_flags: <defaults>
</compile_context>

<pallas_src>
import functools

import jax
import jax.numpy as jnp
from jax.experimental import pallas as pl
from jax.experimental.pallas import tpu as pltpu

BN_EPS = 1e-5
NEG_SLOPE = 0.01  # F.leaky_relu default
LANE = 128
SUBLANE = 8


def _round_up(v, m):
    return (v + m - 1) // m * m


def _vmem_limit_bytes():
    """Per-generation VMEM budget: ~3/4 of physical capacity (96 MiB on v5e/v6e, 48 MiB on v7x)."""
    try:
        cap = pltpu.get_tpu_info().vmem_capacity_bytes
    except Exception:  # interpret mode / unknown chip
        cap = 64 * 1024 * 1024
    return max(32 * 1024 * 1024, (cap * 3) // 4)


# ----------------------------- in-kernel helpers ----------------------------- #
def _leaky_relu(y):
    # single VALU max per element instead of cmp + select
    return jnp.maximum(y, NEG_SLOPE * y)


def _batch_norm(x, gamma, beta):
    """Training-mode BatchNorm1d (biased variance over the node axis), centered form.

    Padded feature columns are all-zero with gamma == beta == 0, so they stay exactly 0
    and per-column statistics of the real columns are unaffected by the padding.
    """
    inv_n = 1.0 / x.shape[0]
    mean = jnp.sum(x, axis=0, keepdims=True) * inv_n
    xc = x - mean
    var = jnp.sum(xc * xc, axis=0, keepdims=True) * inv_n
    return xc * jax.lax.rsqrt(var + BN_EPS) * gamma + beta


# ------------------------------- fused kernel -------------------------------- #
def fused_gcn_kernel(x_ref, g0_ref, b0_ref, w0_ref,
                     gs_ref, bs_ref, ws_ref, bias_ref,
                     a_ref, p_ref, o_ref, *, num_conv_layers):
    # bn_feat -> conv_feat (gfn=True: linear only, no aggregation, no bias) -> leaky_relu
    h = _batch_norm(x_ref[...], g0_ref[...], b0_ref[...])
    # bf16-in / f32-accumulate MXU matmul (weights already bf16).
    h = _leaky_relu(jnp.dot(h.astype(jnp.bfloat16), w0_ref[...],
                            preferred_element_type=jnp.float32))

    a_bf16 = a_ref[...]  # A_hat already bf16; all matmuls below accumulate in f32.

    # 3 conv layers, statically unrolled; stacked params indexed with static i.
    for i in range(num_conv_layers):
        h = _batch_norm(h, gs_ref[i], bs_ref[i])
        xw = jnp.dot(h.astype(jnp.bfloat16), ws_ref[i],
                     preferred_element_type=jnp.float32)
        agg = jnp.dot(a_bf16, xw.astype(jnp.bfloat16),
                      preferred_element_type=jnp.float32)
        h = _leaky_relu(agg + bias_ref[i])

    # global_add_pool: single lane-dense, sublane-aligned (Gp, Hp) HBM write.
    o_ref[...] = jnp.dot(p_ref[...], h, preferred_element_type=jnp.float32)


_VMEM = functools.partial(pl.BlockSpec, memory_space=pltpu.MemorySpace.VMEM)


# -------------------------- one-time parameter prep -------------------------- #
def prepare_params(params):
    """Pad/stack/cast all parameters ONCE (hoisted out of the per-call path).

    Weights are stored bf16 for the MXU fast path; BN params stay f32.
    Padded columns of gamma/beta/bias are zero by construction (jnp.pad), which the
    kernel relies on to keep the padded lanes exactly 0 through every layer.
    """
    num_features, hidden = params["w_feat"].shape
    fp = _round_up(num_features, LANE)
    # TODO(synk): on v6e/v7x (256-wide MXU) pad hidden to 256 instead of 128 once hidden > 128
    # to avoid a 2x MXU N-dimension underutilization cliff.
    hp = _round_up(hidden, LANE)

    def pad_last(a, c):
        return jnp.pad(a, [(0, 0)] * (a.ndim - 1) + [(0, c - a.shape[-1])])

    def pad_2d(a, r, c):
        return jnp.pad(a, [(0, r - a.shape[0]), (0, c - a.shape[1])])

    return {
        "g0": pad_last(params["bn_feat_gamma"], fp),                              # (1, Fp) f32
        "b0": pad_last(params["bn_feat_beta"], fp),                               # (1, Fp) f32
        "w0": pad_2d(params["w_feat"], fp, hp).astype(jnp.bfloat16),              # (Fp, Hp) bf16
        "gammas": jnp.stack([pad_last(l["gamma"], hp) for l in params["layers"]]),  # (L,1,Hp)
        "betas": jnp.stack([pad_last(l["beta"], hp) for l in params["layers"]]),     # (L,1,Hp)
        "ws": jnp.stack([pad_2d(l["w"], hp, hp)
                         for l in params["layers"]]).astype(jnp.bfloat16),           # (L,Hp,Hp)
        "biases": jnp.stack([pad_last(l["b"], hp) for l in params["layers"]]),       # (L,1,Hp)
        "num_features": num_features,
        "hidden": hidden,
    }


# --------------------------------- forward ------------------------------------ #
def gcn_forward(x, a_bf16, pool_mat, g0, b0, w0, gammas, betas, ws, biases,
                *, hidden, num_graphs):
    """Per-call path: pad x to lane-dense width, run the fused kernel once, slice back."""
    fp, hp = w0.shape
    num_conv_layers = ws.shape[0]
    gp = pool_mat.shape[0]

    x_p = jnp.pad(x, ((0, 0), (0, fp - x.shape[1])))  # (N, Fp)
    args = (x_p, g0, b0, w0, gammas, betas, ws, biases, a_bf16, pool_mat)

    # TODO(synk): for large N, tile the aggregation over A_hat row tiles (reduction axis last,
    # f32 VMEM accumulator, pipeline_mode=pl.Buffered(3) on the A_hat BlockSpec) and add a
    # leading size-2 "parallel" grid axis on v7x so both TensorCores are used; at demo shapes
    # everything fits in a single grid-less VMEM-resident invocation.
    out = pl.pallas_call(
        functools.partial(fused_gcn_kernel, num_conv_layers=num_conv_layers),
        out_shape=jax.ShapeDtypeStruct((gp, hp), jnp.float32),
        in_specs=[_VMEM() for _ in args],
        out_specs=_VMEM(),
        compiler_params=pltpu.CompilerParams(vmem_limit_bytes=_vmem_limit_bytes()),
    )(*args)

    # reconstruct == 0.0 -> return graph_emb only; drop padding rows / columns.
    return out[:num_graphs, :hidden]


# ------------------------------ glue (plain JAX) ------------------------------ #
def build_norm_adj(edge_index, num_nodes):
    """Dense GCN-normalized adjacency (self loops, D^-1/2 (A+I) D^-1/2), emitted as bf16."""
    src, dst = edge_index[0], edge_index[1]
    loop = jnp.arange(num_nodes, dtype=src.dtype)
    row = jnp.concatenate([src, loop])
    col = jnp.concatenate([dst, loop])
    w = jnp.ones(row.shape[0], dtype=jnp.float32)
    deg = jnp.zeros((num_nodes,), jnp.float32).at[row].add(w)
    dinv = jnp.where(deg > 0, jax.lax.rsqrt(deg), 0.0)
    norm = dinv[row] * w * dinv[col]
    # out[target] += norm * x[source]  =>  A_hat[target, source] += norm
    a = jnp.zeros((num_nodes, num_nodes), jnp.float32).at[col, row].add(norm)
    return a.astype(jnp.bfloat16)  # cast once at build time, not per call


def build_pool_matrix(batch, num_graphs):
    """Pool matrix with graph rows padded up to a multiple of 8 sublanes (padded rows = 0)."""
    gp = _round_up(num_graphs, SUBLANE)
    rows = jnp.arange(gp, dtype=batch.dtype)[:, None]
    return (batch[None, :] == rows).astype(jnp.float32)  # (Gp, N)


def init_params(key, num_features, hidden, num_conv_layers=3):
    keys = jax.random.split(key, num_conv_layers + 1)

    def glorot(k, shape):
        lim = (6.0 / (shape[0] + shape[1])) ** 0.5
        return jax.random.uniform(k, shape, jnp.float32, minval=-lim, maxval=lim)

    params = {
        "bn_feat_gamma": jnp.ones((1, num_features), jnp.float32),
        "bn_feat_beta": jnp.full((1, num_features), 1e-4, jnp.float32),
        "w_feat": glorot(keys[0], (num_features, hidden)),
        "layers": [],
    }
    for i in range(num_conv_layers):
        params["layers"].append({
            "gamma": jnp.ones((1, hidden), jnp.float32),
            "beta": jnp.full((1, hidden), 1e-4, jnp.float32),
            "w": glorot(keys[i + 1], (hidden, hidden)),
            "b": jnp.zeros((1, hidden), jnp.float32),
        })
    return params


# ----------------------------------- main ------------------------------------ #
if __name__ == "__main__":
    key = jax.random.PRNGKey(0)
    k_x, k_w = jax.random.split(key)

    NUM_FEATURES = 4
    HIDDEN = 32
    NODES_PER_GRAPH = 32
    NUM_GRAPHS = 2
    N = NODES_PER_GRAPH * NUM_GRAPHS

    # deterministic node features and graph assignment
    x = jax.random.normal(k_x, (N, NUM_FEATURES), jnp.float32)
    batch = jnp.concatenate([
        jnp.full((NODES_PER_GRAPH,), g, jnp.int32) for g in range(NUM_GRAPHS)
    ])

    # undirected ring within each graph as edge_index [2, E]
    def ring_edges(start, n):
        nodes = jnp.arange(n, dtype=jnp.int32) + start
        nxt = jnp.roll(nodes, -1)
        return jnp.concatenate([nodes, nxt]), jnp.concatenate([nxt, nodes])

    srcs, dsts = [], []
    for g in range(NUM_GRAPHS):
        s, d = ring_edges(g * NODES_PER_GRAPH, NODES_PER_GRAPH)
        srcs.append(s)
        dsts.append(d)
    edge_index = jnp.stack([jnp.concatenate(srcs), jnp.concatenate(dsts)])

    # one-time prep (hoisted out of the forward call path)
    a_bf16 = build_norm_adj(edge_index, N)
    pool_mat = build_pool_matrix(batch, NUM_GRAPHS)
    prepped = prepare_params(init_params(k_w, NUM_FEATURES, HIDDEN, num_conv_layers=3))

    fwd = jax.jit(functools.partial(gcn_forward, hidden=HIDDEN, num_graphs=NUM_GRAPHS))
    graph_emb = fwd(x, a_bf16, pool_mat,
                    prepped["g0"], prepped["b0"], prepped["w0"],
                    prepped["gammas"], prepped["betas"], prepped["ws"], prepped["biases"])
    graph_emb = jax.block_until_ready(graph_emb)

    assert graph_emb.shape == (NUM_GRAPHS, HIDDEN)
    assert bool(jnp.all(jnp.isfinite(graph_emb)))
    print("KERNEL_OK")
</pallas_src>

<mosaic_0001>
module attributes {stable_mosaic.version = 11 : i64} {
  func.func @fused_gcn_kernel(%arg0: memref<64x128xf32, #tpu.memory_space<vmem>>, %arg1: memref<1x128xf32, #tpu.memory_space<vmem>>, %arg2: memref<1x128xf32, #tpu.memory_space<vmem>>, %arg3: memref<128x128xbf16, #tpu.memory_space<vmem>>, %arg4: memref<3x1x128xf32, #tpu.memory_space<vmem>>, %arg5: memref<3x1x128xf32, #tpu.memory_space<vmem>>, %arg6: memref<3x128x128xbf16, #tpu.memory_space<vmem>>, %arg7: memref<3x1x128xf32, #tpu.memory_space<vmem>>, %arg8: memref<64x64xbf16, #tpu.memory_space<vmem>>, %arg9: memref<8x64xf32, #tpu.memory_space<vmem>>, %arg10: memref<8x128xf32, #tpu.memory_space<vmem>>) attributes {dimension_semantics = [], scalar_prefetch = 0 : i64, scratch_operands = 0 : i64, tpu.core_type = #tpu.core_type<tc>} {
    %c0 = arith.constant 0 : index
    %c0_0 = arith.constant 0 : index
    %0 = vector.load %arg0[%c0, %c0_0] : memref<64x128xf32, #tpu.memory_space<vmem>>, vector<64x128xf32>
    %c0_1 = arith.constant 0 : index
    %c0_2 = arith.constant 0 : index
    %1 = vector.load %arg1[%c0_1, %c0_2] : memref<1x128xf32, #tpu.memory_space<vmem>>, vector<1x128xf32>
    %c0_3 = arith.constant 0 : index
    %c0_4 = arith.constant 0 : index
    %2 = vector.load %arg2[%c0_3, %c0_4] : memref<1x128xf32, #tpu.memory_space<vmem>>, vector<1x128xf32>
    %cst = arith.constant dense<0.000000e+00> : vector<128xf32>
    %3 = vector.multi_reduction <add>, %0, %cst [0] : vector<64x128xf32> to vector<128xf32>
    %4 = vector.shape_cast %3 : vector<128xf32> to vector<1x128xf32>
    %cst_5 = arith.constant 1.562500e-02 : f32
    %5 = vector.broadcast %cst_5 : f32 to vector<1x128xf32>
    %6 = arith.mulf %4, %5 : vector<1x128xf32>
    %7 = vector.broadcast %6 : vector<1x128xf32> to vector<64x128xf32>
    %8 = arith.subf %0, %7 : vector<64x128xf32>
    %9 = arith.mulf %8, %8 : vector<64x128xf32>
    %cst_6 = arith.constant dense<0.000000e+00> : vector<128xf32>
    %10 = vector.multi_reduction <add>, %9, %cst_6 [0] : vector<64x128xf32> to vector<128xf32>
    %11 = vector.shape_cast %10 : vector<128xf32> to vector<1x128xf32>
    %cst_7 = arith.constant 1.562500e-02 : f32
    %12 = vector.broadcast %cst_7 : f32 to vector<1x128xf32>
    %13 = arith.mulf %11, %12 : vector<1x128xf32>
    %cst_8 = arith.constant 9.99999974E-6 : f32
    %14 = vector.broadcast %cst_8 : f32 to vector<1x128xf32>
    %15 = arith.addf %13, %14 : vector<1x128xf32>
    %16 = math.rsqrt %15 : vector<1x128xf32>
    %17 = vector.broadcast %16 : vector<1x128xf32> to vector<64x128xf32>
    %18 = arith.mulf %8, %17 : vector<64x128xf32>
    %19 = vector.broadcast %1 : vector<1x128xf32> to vector<64x128xf32>
    %20 = arith.mulf %18, %19 : vector<64x128xf32>
    %21 = vector.broadcast %2 : vector<1x128xf32> to vector<64x128xf32>
    %22 = arith.addf %20, %21 : vector<64x128xf32>
    %23 = arith.truncf %22 : vector<64x128xf32> to vector<64x128xbf16>
    %c0_9 = arith.constant 0 : index
    %c0_10 = arith.constant 0 : index
    %24 = vector.load %arg3[%c0_9, %c0_10] : memref<128x128xbf16, #tpu.memory_space<vmem>>, vector<128x128xbf16>
    %cst_11 = arith.constant dense<0.000000e+00> : vector<64x128xf32>
    %25 = tpu.matmul %23, %24, %cst_11 {dimension_numbers = #tpu.dot_dimension_numbers<[1], [0], [0], [1], [0, 0, 1, 1], [], []>} : vector<64x128xbf16>, vector<128x128xbf16>, vector<64x128xf32> -> vector<64x128xf32>
    %cst_12 = arith.constant 0.00999999977 : f32
    %26 = vector.broadcast %cst_12 : f32 to vector<64x128xf32>
    %27 = arith.mulf %26, %25 : vector<64x128xf32>
    %28 = arith.maximumf %25, %27 : vector<64x128xf32>
    %c0_13 = arith.constant 0 : index
    %c0_14 = arith.constant 0 : index
    %29 = vector.load %arg8[%c0_13, %c0_14] : memref<64x64xbf16, #tpu.memory_space<vmem>>, vector<64x64xbf16>
    %c0_15 = arith.constant 0 : index
    %c0_16 = arith.constant 0 : index
    %c0_17 = arith.constant 0 : index
    %30 = vector.load %arg4[%c0_15, %c0_16, %c0_17] : memref<3x1x128xf32, #tpu.memory_space<vmem>>, vector<1x1x128xf32>
    %31 = vector.shape_cast %30 : vector<1x1x128xf32> to vector<1x128xf32>
    %c0_18 = arith.constant 0 : index
    %c0_19 = arith.constant 0 : index
    %c0_20 = arith.constant 0 : index
    %32 = vector.load %arg5[%c0_18, %c0_19, %c0_20] : memref<3x1x128xf32, #tpu.memory_space<vmem>>, vector<1x1x128xf32>
    %33 = vector.shape_cast %32 : vector<1x1x128xf32> to vector<1x128xf32>
    %cst_21 = arith.constant dense<0.000000e+00> : vector<128xf32>
    %34 = vector.multi_reduction <add>, %28, %cst_21 [0] : vector<64x128xf32> to vector<128xf32>
    %35 = vector.shape_cast %34 : vector<128xf32> to vector<1x128xf32>
    %cst_22 = arith.constant 1.562500e-02 : f32
    %36 = vector.broadcast %cst_22 : f32 to vector<1x128xf32>
    %37 = arith.mulf %35, %36 : vector<1x128xf32>
    %38 = vector.broadcast %37 : vector<1x128xf32> to vector<64x128xf32>
    %39 = arith.subf %28, %38 : vector<64x128xf32>
    %40 = arith.mulf %39, %39 : vector<64x128xf32>
    %cst_23 = arith.constant dense<0.000000e+00> : vector<128xf32>
    %41 = vector.multi_reduction <add>, %40, %cst_23 [0] : vector<64x128xf32> to vector<128xf32>
    %42 = vector.shape_cast %41 : vector<128xf32> to vector<1x128xf32>
    %cst_24 = arith.constant 1.562500e-02 : f32
    %43 = vector.broadcast %cst_24 : f32 to vector<1x128xf32>
    %44 = arith.mulf %42, %43 : vector<1x128xf32>
    %cst_25 = arith.constant 9.99999974E-6 : f32
    %45 = vector.broadcast %cst_25 : f32 to vector<1x128xf32>
    %46 = arith.addf %44, %45 : vector<1x128xf32>
    %47 = math.rsqrt %46 : vector<1x128xf32>
    %48 = vector.broadcast %47 : vector<1x128xf32> to vector<64x128xf32>
    %49 = arith.mulf %39, %48 : vector<64x128xf32>
    %50 = vector.broadcast %31 : vector<1x128xf32> to vector<64x128xf32>
    %51 = arith.mulf %49, %50 : vector<64x128xf32>
    %52 = vector.broadcast %33 : vector<1x128xf32> to vector<64x128xf32>
    %53 = arith.addf %51, %52 : vector<64x128xf32>
    %54 = arith.truncf %53 : vector<64x128xf32> to vector<64x128xbf16>
    %c0_26 = arith.constant 0 : index
    %c0_27 = arith.constant 0 : index
    %c0_28 = arith.constant 0 : index
    %55 = vector.load %arg6[%c0_26, %c0_27, %c0_28] : memref<3x128x128xbf16, #tpu.memory_space<vmem>>, vector<1x128x128xbf16>
    %56 = vector.shape_cast %55 : vector<1x128x128xbf16> to vector<128x128xbf16>
    %cst_29 = arith.constant dense<0.000000e+00> : vector<64x128xf32>
    %57 = tpu.matmul %54, %56, %cst_29 {dimension_numbers = #tpu.dot_dimension_numbers<[1], [0], [0], [1], [0, 0, 1, 1], [], []>} : vector<64x128xbf16>, vector<128x128xbf16>, vector<64x128xf32> -> vector<64x128xf32>
    %58 = arith.truncf %57 : vector<64x128xf32> to vector<64x128xbf16>
    %cst_30 = arith.constant dense<0.000000e+00> : vector<64x128xf32>
    %59 = tpu.matmul %29, %58, %cst_30 {dimension_numbers = #tpu.dot_dimension_numbers<[1], [0], [0], [1], [0, 0, 1, 1], [], []>} : vector<64x64xbf16>, vector<64x128xbf16>, vector<64x128xf32> -> vector<64x128xf32>
    %c0_31 = arith.constant 0 : index
    %c0_32 = arith.constant 0 : index
    %c0_33 = arith.constant 0 : index
    %60 = vector.load %arg7[%c0_31, %c0_32, %c0_33] : memref<3x1x128xf32, #tpu.memory_space<vmem>>, vector<1x1x128xf32>
    %61 = vector.shape_cast %60 : vector<1x1x128xf32> to vector<1x128xf32>
    %62 = vector.broadcast %61 : vector<1x128xf32> to vector<64x128xf32>
    %63 = arith.addf %59, %62 : vector<64x128xf32>
    %cst_34 = arith.constant 0.00999999977 : f32
    %64 = vector.broadcast %cst_34 : f32 to vector<64x128xf32>
    %65 = arith.mulf %64, %63 : vector<64x128xf32>
    %66 = arith.maximumf %63, %65 : vector<64x128xf32>
    %c1 = arith.constant 1 : index
    %c0_35 = arith.constant 0 : index
    %c0_36 = arith.constant 0 : index
    %67 = vector.load %arg4[%c1, %c0_35, %c0_36] : memref<3x1x128xf32, #tpu.memory_space<vmem>>, vector<1x1x128xf32>
    %68 = vector.shape_cast %67 : vector<1x1x128xf32> to vector<1x128xf32>
    %c1_37 = arith.constant 1 : index
    %c0_38 = arith.constant 0 : index
    %c0_39 = arith.constant 0 : index
    %69 = vector.load %arg5[%c1_37, %c0_38, %c0_39] : memref<3x1x128xf32, #tpu.memory_space<vmem>>, vector<1x1x128xf32>
    %70 = vector.shape_cast %69 : vector<1x1x128xf32> to vector<1x128xf32>
    %cst_40 = arith.constant dense<0.000000e+00> : vector<128xf32>
    %71 = vector.multi_reduction <add>, %66, %cst_40 [0] : vector<64x128xf32> to vector<128xf32>
    %72 = vector.shape_cast %71 : vector<128xf32> to vector<1x128xf32>
    %cst_41 = arith.constant 1.562500e-02 : f32
    %73 = vector.broadcast %cst_41 : f32 to vector<1x128xf32>
    %74 = arith.mulf %72, %73 : vector<1x128xf32>
    %75 = vector.broadcast %74 : vector<1x128xf32> to vector<64x128xf32>
    %76 = arith.subf %66, %75 : vector<64x128xf32>
    %77 = arith.mulf %76, %76 : vector<64x128xf32>
    %cst_42 = arith.constant dense<0.000000e+00> : vector<128xf32>
    %78 = vector.multi_reduction <add>, %77, %cst_42 [0] : vector<64x128xf32> to vector<128xf32>
    %79 = vector.shape_cast %78 : vector<128xf32> to vector<1x128xf32>
    %cst_43 = arith.constant 1.562500e-02 : f32
    %80 = vector.broadcast %cst_43 : f32 to vector<1x128xf32>
    %81 = arith.mulf %79, %80 : vector<1x128xf32>
    %cst_44 = arith.constant 9.99999974E-6 : f32
    %82 = vector.broadcast %cst_44 : f32 to vector<1x128xf32>
    %83 = arith.addf %81, %82 : vector<1x128xf32>
    %84 = math.rsqrt %83 : vector<1x128xf32>
    %85 = vector.broadcast %84 : vector<1x128xf32> to vector<64x128xf32>
    %86 = arith.mulf %76, %85 : vector<64x128xf32>
    %87 = vector.broadcast %68 : vector<1x128xf32> to vector<64x128xf32>
    %88 = arith.mulf %86, %87 : vector<64x128xf32>
    %89 = vector.broadcast %70 : vector<1x128xf32> to vector<64x128xf32>
    %90 = arith.addf %88, %89 : vector<64x128xf32>
    %91 = arith.truncf %90 : vector<64x128xf32> to vector<64x128xbf16>
    %c1_45 = arith.constant 1 : index
    %c0_46 = arith.constant 0 : index
    %c0_47 = arith.constant 0 : index
    %92 = vector.load %arg6[%c1_45, %c0_46, %c0_47] : memref<3x128x128xbf16, #tpu.memory_space<vmem>>, vector<1x128x128xbf16>
    %93 = vector.shape_cast %92 : vector<1x128x128xbf16> to vector<128x128xbf16>
    %cst_48 = arith.constant dense<0.000000e+00> : vector<64x128xf32>
    %94 = tpu.matmul %91, %93, %cst_48 {dimension_numbers = #tpu.dot_dimension_numbers<[1], [0], [0], [1], [0, 0, 1, 1], [], []>} : vector<64x128xbf16>, vector<128x128xbf16>, vector<64x128xf32> -> vector<64x128xf32>
    %95 = arith.truncf %94 : vector<64x128xf32> to vector<64x128xbf16>
    %cst_49 = arith.constant dense<0.000000e+00> : vector<64x128xf32>
    %96 = tpu.matmul %29, %95, %cst_49 {dimension_numbers = #tpu.dot_dimension_numbers<[1], [0], [0], [1], [0, 0, 1, 1], [], []>} : vector<64x64xbf16>, vector<64x128xbf16>, vector<64x128xf32> -> vector<64x128xf32>
    %c1_50 = arith.constant 1 : index
    %c0_51 = arith.constant 0 : index
    %c0_52 = arith.constant 0 : index
    %97 = vector.load %arg7[%c1_50, %c0_51, %c0_52] : memref<3x1x128xf32, #tpu.memory_space<vmem>>, vector<1x1x128xf32>
    %98 = vector.shape_cast %97 : vector<1x1x128xf32> to vector<1x128xf32>
    %99 = vector.broadcast %98 : vector<1x128xf32> to vector<64x128xf32>
    %100 = arith.addf %96, %99 : vector<64x128xf32>
    %cst_53 = arith.constant 0.00999999977 : f32
    %101 = vector.broadcast %cst_53 : f32 to vector<64x128xf32>
    %102 = arith.mulf %101, %100 : vector<64x128xf32>
    %103 = arith.maximumf %100, %102 : vector<64x128xf32>
    %c2 = arith.constant 2 : index
    %c0_54 = arith.constant 0 : index
    %c0_55 = arith.constant 0 : index
    %104 = vector.load %arg4[%c2, %c0_54, %c0_55] : memref<3x1x128xf32, #tpu.memory_space<vmem>>, vector<1x1x128xf32>
    %105 = vector.shape_cast %104 : vector<1x1x128xf32> to vector<1x128xf32>
    %c2_56 = arith.constant 2 : index
    %c0_57 = arith.constant 0 : index
    %c0_58 = arith.constant 0 : index
    %106 = vector.load %arg5[%c2_56, %c0_57, %c0_58] : memref<3x1x128xf32, #tpu.memory_space<vmem>>, vector<1x1x128xf32>
    %107 = vector.shape_cast %106 : vector<1x1x128xf32> to vector<1x128xf32>
    %cst_59 = arith.constant dense<0.000000e+00> : vector<128xf32>
    %108 = vector.multi_reduction <add>, %103, %cst_59 [0] : vector<64x128xf32> to vector<128xf32>
    %109 = vector.shape_cast %108 : vector<128xf32> to vector<1x128xf32>
    %cst_60 = arith.constant 1.562500e-02 : f32
    %110 = vector.broadcast %cst_60 : f32 to vector<1x128xf32>
    %111 = arith.mulf %109, %110 : vector<1x128xf32>
    %112 = vector.broadcast %111 : vector<1x128xf32> to vector<64x128xf32>
    %113 = arith.subf %103, %112 : vector<64x128xf32>
    %114 = arith.mulf %113, %113 : vector<64x128xf32>
    %cst_61 = arith.constant dense<0.000000e+00> : vector<128xf32>
    %115 = vector.multi_reduction <add>, %114, %cst_61 [0] : vector<64x128xf32> to vector<128xf32>
    %116 = vector.shape_cast %115 : vector<128xf32> to vector<1x128xf32>
    %cst_62 = arith.constant 1.562500e-02 : f32
    %117 = vector.broadcast %cst_62 : f32 to vector<1x128xf32>
    %118 = arith.mulf %116, %117 : vector<1x128xf32>
    %cst_63 = arith.constant 9.99999974E-6 : f32
    %119 = vector.broadcast %cst_63 : f32 to vector<1x128xf32>
    %120 = arith.addf %118, %119 : vector<1x128xf32>
    %121 = math.rsqrt %120 : vector<1x128xf32>
    %122 = vector.broadcast %121 : vector<1x128xf32> to vector<64x128xf32>
    %123 = arith.mulf %113, %122 : vector<64x128xf32>
    %124 = vector.broadcast %105 : vector<1x128xf32> to vector<64x128xf32>
    %125 = arith.mulf %123, %124 : vector<64x128xf32>
    %126 = vector.broadcast %107 : vector<1x128xf32> to vector<64x128xf32>
    %127 = arith.addf %125, %126 : vector<64x128xf32>
    %128 = arith.truncf %127 : vector<64x128xf32> to vector<64x128xbf16>
    %c2_64 = arith.constant 2 : index
    %c0_65 = arith.constant 0 : index
    %c0_66 = arith.constant 0 : index
    %129 = vector.load %arg6[%c2_64, %c0_65, %c0_66] : memref<3x128x128xbf16, #tpu.memory_space<vmem>>, vector<1x128x128xbf16>
    %130 = vector.shape_cast %129 : vector<1x128x128xbf16> to vector<128x128xbf16>
    %cst_67 = arith.constant dense<0.000000e+00> : vector<64x128xf32>
    %131 = tpu.matmul %128, %130, %cst_67 {dimension_numbers = #tpu.dot_dimension_numbers<[1], [0], [0], [1], [0, 0, 1, 1], [], []>} : vector<64x128xbf16>, vector<128x128xbf16>, vector<64x128xf32> -> vector<64x128xf32>
    %132 = arith.truncf %131 : vector<64x128xf32> to vector<64x128xbf16>
    %cst_68 = arith.constant dense<0.000000e+00> : vector<64x128xf32>
    %133 = tpu.matmul %29, %132, %cst_68 {dimension_numbers = #tpu.dot_dimension_numbers<[1], [0], [0], [1], [0, 0, 1, 1], [], []>} : vector<64x64xbf16>, vector<64x128xbf16>, vector<64x128xf32> -> vector<64x128xf32>
    %c2_69 = arith.constant 2 : index
    %c0_70 = arith.constant 0 : index
    %c0_71 = arith.constant 0 : index
    %134 = vector.load %arg7[%c2_69, %c0_70, %c0_71] : memref<3x1x128xf32, #tpu.memory_space<vmem>>, vector<1x1x128xf32>
    %135 = vector.shape_cast %134 : vector<1x1x128xf32> to vector<1x128xf32>
    %136 = vector.broadcast %135 : vector<1x128xf32> to vector<64x128xf32>
    %137 = arith.addf %133, %136 : vector<64x128xf32>
    %cst_72 = arith.constant 0.00999999977 : f32
    %138 = vector.broadcast %cst_72 : f32 to vector<64x128xf32>
    %139 = arith.mulf %138, %137 : vector<64x128xf32>
    %140 = arith.maximumf %137, %139 : vector<64x128xf32>
    %c0_73 = arith.constant 0 : index
    %c0_74 = arith.constant 0 : index
    %141 = vector.load %arg9[%c0_73, %c0_74] : memref<8x64xf32, #tpu.memory_space<vmem>>, vector<8x64xf32>
    %cst_75 = arith.constant dense<0.000000e+00> : vector<8x128xf32>
    %142 = tpu.matmul %141, %140, %cst_75 {dimension_numbers = #tpu.dot_dimension_numbers<[1], [0], [0], [1], [0, 0, 1, 1], [], []>} : vector<8x64xf32>, vector<64x128xf32>, vector<8x128xf32> -> vector<8x128xf32>
    %c0_76 = arith.constant 0 : index
    %c0_77 = arith.constant 0 : index
    %143 = vector.load %arg10[%c0_76, %c0_77] : memref<8x128xf32, #tpu.memory_space<vmem>>, vector<8x128xf32>
    tpu.vector_store %arg10[%c0_76, %c0_77], %142 {strides = array<i32>} : memref<8x128xf32, #tpu.memory_space<vmem>>, vector<8x128xf32>,
    return
  }
}

</mosaic_0001>

<llo_original>
// kernel: gcn_forward.1
$region0: #{gcn_forward.1}
  #allocation0 [shape = 'u32[]', space=smem, size = 0x4, offset = 0x4, fixed_abs, tag = 'smem constant byte address 0x4 - core index']
  #allocation1 [shape = 'u32[144,128]{1,0:T(1,128)}', space=vmem, size = 0x12000, scoped, tag = 'internal scratch']
  %s0 = inlined_call_operand.vmem [shape: f32[64,128], index: 0, kind: input, shape index: {}]
  %s1 = inlined_call_operand.vmem [shape: f32[1,128], index: 1, kind: input, shape index: {}]
  %s2 = inlined_call_operand.vmem [shape: f32[1,128], index: 2, kind: input, shape index: {}]
  %s3 = inlined_call_operand.hbm [shape: bf16[128,128], index: 3, kind: input, shape index: {}]
  %s4 = inlined_call_operand.vmem [shape: f32[3,1,128], index: 4, kind: input, shape index: {}]
  %s5 = inlined_call_operand.vmem [shape: f32[3,1,128], index: 5, kind: input, shape index: {}]
  %s6 = inlined_call_operand.vmem [shape: bf16[3,128,128], index: 6, kind: input, shape index: {}]
  %s7 = inlined_call_operand.vmem [shape: f32[3,1,128], index: 7, kind: input, shape index: {}]
  %s8 = inlined_call_operand.hbm [shape: bf16[64,64], index: 8, kind: input, shape index: {}]
  %s9 = inlined_call_operand.vmem [shape: f32[8,64], index: 9, kind: input, shape index: {}]
  %s10 = inlined_call_operand.vmem [shape: f32[8,128], index: 10, kind: output, shape index: {}]
  %s11 = sld [smem:[#allocation0]]
  $region58: #{gcn_forward.1} parent=0
    _
  %s13 = ssub.s32 1, %s11
  %s14 = scalar_select 0, %s13, %s11
  $region1: #{gcn_forward.1} parent=0
    #allocation2 [shape = 'u8[32768]{0}', space=vmem, size = 0x8000, scoped, tag = 'input window, operand 3, single buffered']
    #allocation3 [shape = 's32[1]{0}', space=sflag, size = 0x4, scoped, tag = 'scoped memory for gcn_forward.1']
    #allocation4 [shape = 'u8[16384]{0}', space=vmem, size = 0x4000, scoped, tag = 'input window, operand 8, single buffered']
    #allocation5 [shape = 's32[1]{0}', space=sflag, size = 0x4, scoped, tag = 'scoped memory for gcn_forward.1']
    %15 = vsyncpa [#allocation3], 0
    %16 = vsyncpa [#allocation5], 0
    // Predicated region
    $region2: #{gcn_forward.1} parent=1 // pred_check
      _
    $region3: #{gcn_forward.1} parent=1 // pred_check_branch
      %18 = sbr.rel (0) target = $region5
    $region4: #{gcn_forward.1} parent=1 // pred_region
      _
    $region5: #{gcn_forward.1} parent=1 // pred_fallthru
      _
    // Predicated region
    $region6: #{gcn_forward.1} parent=1 // pred_check
      _
    $region7: #{gcn_forward.1} parent=1 // pred_check_branch
      %20 = sbr.rel (0) target = $region9
    $region8: #{gcn_forward.1} parent=1 // pred_region
      _
    $region9: #{gcn_forward.1} parent=1 // pred_fallthru
      _
    // Predicated region
    $region10: #{gcn_forward.1} parent=1 // pred_check
      _
    $region11: #{gcn_forward.1} parent=1 // pred_check_branch
      %22 = sbr.rel (0) target = $region13
    $region12: #{gcn_forward.1} parent=1 // pred_region
      _
    $region13: #{gcn_forward.1} parent=1 // pred_fallthru
      _
    // Predicated region
    $region14: #{gcn_forward.1} parent=1 // pred_check
      _
    $region15: #{gcn_forward.1} parent=1 // pred_check_branch
      %24 = sbr.rel (0) target = $region17
    $region16: #{gcn_forward.1} parent=1 // pred_region
      %s26 = ssub.s32 1024, 1024
      %27 = vsyncadd [#allocation3], %s26
      %s28 = sshll.u32 [#allocation2], 4
      %s29 = int_to_ptr.vmem [resolvable:$true] %s28
      %34 = dma.hbm_to_vmem [thread:$0]  %s3, 1024, %s29, [#allocation3], 64, 64, 4
    $region17: #{gcn_forward.1} parent=1 // pred_fallthru
      _
    // Predicated region
    $region18: #{gcn_forward.1} parent=1 // pred_check
      _
    $region19: #{gcn_forward.1} parent=1 // pred_check_branch
      %36 = sbr.rel (0) target = $region21
    $region20: #{gcn_forward.1} parent=1 // pred_region
      _
    $region21: #{gcn_forward.1} parent=1 // pred_fallthru
      _
    // Predicated region
    $region22: #{gcn_forward.1} parent=1 // pred_check
      _
    $region23: #{gcn_forward.1} parent=1 // pred_check_branch
      %38 = sbr.rel (0) target = $region25
    $region24: #{gcn_forward.1} parent=1 // pred_region
      _
    $region25: #{gcn_forward.1} parent=1 // pred_fallthru
      _
    // Predicated region
    $region26: #{gcn_forward.1} parent=1 // pred_check
      _
    $region27: #{gcn_forward.1} parent=1 // pred_check_branch
      %40 = sbr.rel (0) target = $region29
    $region28: #{gcn_forward.1} parent=1 // pred_region
      _
    $region29: #{gcn_forward.1} parent=1 // pred_fallthru
      _
    // Predicated region
    $region30: #{gcn_forward.1} parent=1 // pred_check
      _
    $region31: #{gcn_forward.1} parent=1 // pred_check_branch
      %42 = sbr.rel (0) target = $region33
    $region32: #{gcn_forward.1} parent=1 // pred_region
      _
    $region33: #{gcn_forward.1} parent=1 // pred_fallthru
      _
    // Predicated region
    $region34: #{gcn_forward.1} parent=1 // pred_check
      _
    $region35: #{gcn_forward.1} parent=1 // pred_check_branch
      %44 = sbr.rel (0) target = $region37
    $region36: #{gcn_forward.1} parent=1 // pred_region
      %s46 = ssub.s32 512, 512
      %47 = vsyncadd [#allocation5], %s46
      %s48 = sshll.u32 [#allocation4], 4
      %s49 = int_to_ptr.vmem [resolvable:$true] %s48
      %54 = dma.hbm_to_vmem [thread:$0]  %s8, 512, %s49, [#allocation5], 64, 64, 4
    $region37: #{gcn_forward.1} parent=1 // pred_fallthru
      _
    // Predicated region
    $region38: #{gcn_forward.1} parent=1 // pred_check
      _
    $region39: #{gcn_forward.1} parent=1 // pred_check_branch
      %56 = sbr.rel (0) target = $region41
    $region40: #{gcn_forward.1} parent=1 // pred_region
      _
    $region41: #{gcn_forward.1} parent=1 // pred_fallthru
      _
    // Predicated region
    $region42: #{gcn_forward.1} parent=1 // pred_check
      _
    $region43: #{gcn_forward.1} parent=1 // pred_check_branch
      %58 = sbr.rel (0) target = $region45
    $region44: #{gcn_forward.1} parent=1 // pred_region
      %59 = dma.done [#allocation3], 1024
    $region45: #{gcn_forward.1} parent=1 // pred_fallthru
      _
    // Predicated region
    $region46: #{gcn_forward.1} parent=1 // pred_check
      _
    $region47: #{gcn_forward.1} parent=1 // pred_check_branch
      %61 = sbr.rel (0) target = $region49
    $region48: #{gcn_forward.1} parent=1 // pred_region
      %62 = dma.done [#allocation5], 512
    $region49: #{gcn_forward.1} parent=1 // pred_fallthru
      _
    %v64 = vld [vmem:[%s0] sm:$0xff]
    %v65 = vld [vmem:[%s0 + $0x8] sm:$0xff]
    %v66 = vld [vmem:[%s0 + $0x10] sm:$0xff]
    %v67 = vld [vmem:[%s0 + $0x18] sm:$0xff]
    %v68 = vld [vmem:[%s0 + $0x20] sm:$0xff]
    %v69 = vld [vmem:[%s0 + $0x28] sm:$0xff]
    %v70 = vld [vmem:[%s0 + $0x30] sm:$0xff]
    %v71 = vld [vmem:[%s0 + $0x38] sm:$0xff]
    %v72 = vld [vmem:[%s1] sm:$0x1]
    %v73 = vld [vmem:[%s2] sm:$0x1]
    %v74 = vadd.f32 %v64, %v65
    %v75 = vadd.f32 %v74, %v66
    %v76 = vadd.f32 %v75, %v67
    %v77 = vadd.f32 %v76, %v68
    %v78 = vadd.f32 %v77, %v69
    %v79 = vadd.f32 %v78, %v70
    %v80 = vadd.f32 %v79, %v71
    %v81 = vrot.slane %v80, 4
    %v82 = vadd.f32 %v80, %v81
    %v83 = vrot.slane %v82, 2
    %v84 = vadd.f32 %v82, %v83
    %v85 = vrot.slane %v84, 1
    %v86 = vadd.f32 %v84, %v85
    %v87 = vmul.f32 %v86, 0.015625
    %v88 = vsub.f32 %v64, %v87
    %v89 = vsub.f32 %v65, %v87
    %v90 = vsub.f32 %v66, %v87
    %v91 = vsub.f32 %v67, %v87
    %v92 = vsub.f32 %v68, %v87
    %v93 = vsub.f32 %v69, %v87
    %v94 = vsub.f32 %v70, %v87
    %v95 = vsub.f32 %v71, %v87
    %v96 = vmul.f32 %v88, %v88
    %v97 = vmul.f32 %v89, %v89
    %v98 = vmul.f32 %v90, %v90
    %v99 = vmul.f32 %v91, %v91
    %v100 = vmul.f32 %v92, %v92
    %v101 = vmul.f32 %v93, %v93
    %v102 = vmul.f32 %v94, %v94
    %v103 = vmul.f32 %v95, %v95
    %v104 = vadd.f32 %v96, %v97
    %v105 = vadd.f32 %v104, %v98
    %v106 = vadd.f32 %v105, %v99
    %v107 = vadd.f32 %v106, %v100
    %v108 = vadd.f32 %v107, %v101
    %v109 = vadd.f32 %v108, %v102
    %v110 = vadd.f32 %v109, %v103
    %v111 = vrot.slane %v110, 4
    %v112 = vadd.f32 %v110, %v111
    %v113 = vrot.slane %v112, 2
    %v114 = vadd.f32 %v112, %v113
    %v115 = vrot.slane %v114, 1
    %v116 = vadd.f32 %v114, %v115
    %v117 = vmul.f32 %v116, 0.015625
    %v118 = vadd.f32 %v117, 1e-05
    %v119 = vrsqrt.pop %v118
    %v120 = vmul.f32 %v88, %v119
    %v121 = vmul.f32 %v89, %v119
    %v122 = vmul.f32 %v90, %v119
    %v123 = vmul.f32 %v91, %v119
    %v124 = vmul.f32 %v92, %v119
    %v125 = vmul.f32 %v93, %v119
    %v126 = vmul.f32 %v94, %v119
    %v127 = vmul.f32 %v95, %v119
    %v129 = vlaneseq
    %v130 = vshrl.u32 %v129, 7
    %v131 = vsub.s32 0, %v130
    %v132 = vrot.slane %v72, %v131
    %v134 = vmul.f32 %v120, %v132
    %v135 = vmul.f32 %v121, %v132
    %v136 = vmul.f32 %v122, %v132
    %v137 = vmul.f32 %v123, %v132
    %v138 = vmul.f32 %v124, %v132
    %v139 = vmul.f32 %v125, %v132
    %v140 = vmul.f32 %v126, %v132
    %v141 = vmul.f32 %v127, %v132
    %v143 = vlaneseq
    %v144 = vshrl.u32 %v143, 7
    %v145 = vsub.s32 0, %v144
    %v146 = vrot.slane %v73, %v145
    %v148 = vadd.f32 %v134, %v146
    %v149 = vadd.f32 %v135, %v146
    %v150 = vadd.f32 %v136, %v146
    %v151 = vadd.f32 %v137, %v146
    %v152 = vadd.f32 %v138, %v146
    %v153 = vadd.f32 %v139, %v146
    %v154 = vadd.f32 %v140, %v146
    %v155 = vadd.f32 %v141, %v146
    %v156 = vpack.c.bf16 %v149, %v148
    %v157 = vpack.c.bf16 %v151, %v150
    %v158 = vpack.c.bf16 %v153, %v152
    %v159 = vpack.c.bf16 %v155, %v154
    %v160 = vld [vmem:[#allocation2] sm:$0xf]
    %v161 = vld [vmem:[#allocation2 + $0x4] sm:$0xf]
    %v162 = vld [vmem:[#allocation2 + $0x8] sm:$0xf]
    %v163 = vld [vmem:[#allocation2 + $0xc] sm:$0xf]
    %v164 = vld [vmem:[#allocation2 + $0x10] sm:$0xf]
    %v165 = vld [vmem:[#allocation2 + $0x14] sm:$0xf]
    %v166 = vld [vmem:[#allocation2 + $0x18] sm:$0xf]
    %v167 = vld [vmem:[#allocation2 + $0x1c] sm:$0xf]
    %v168 = vld [vmem:[#allocation2 + $0x20] sm:$0xf]
    %v169 = vld [vmem:[#allocation2 + $0x24] sm:$0xf]
    %v170 = vld [vmem:[#allocation2 + $0x28] sm:$0xf]
    %v171 = vld [vmem:[#allocation2 + $0x2c] sm:$0xf]
    %v172 = vld [vmem:[#allocation2 + $0x30] sm:$0xf]
    %v173 = vld [vmem:[#allocation2 + $0x34] sm:$0xf]
    %v174 = vld [vmem:[#allocation2 + $0x38] sm:$0xf]
    %v175 = vld [vmem:[#allocation2 + $0x3c] sm:$0xf]
    %v192 = vunpack.c.l.b16 %v160
    %v193 = vunpack.c.l.b16 %v161
    %v194 = vunpack.c.l.b16 %v162
    %v195 = vunpack.c.l.b16 %v163
    %v196 = vunpack.c.l.b16 %v164
    %v197 = vunpack.c.l.b16 %v165
    %v198 = vunpack.c.l.b16 %v166
    %v199 = vunpack.c.l.b16 %v167
    %v200 = vunpack.c.l.b16 %v168
    %v201 = vunpack.c.l.b16 %v169
    %v202 = vunpack.c.l.b16 %v170
    %v203 = vunpack.c.l.b16 %v171
    %v204 = vunpack.c.l.b16 %v172
    %v205 = vunpack.c.l.b16 %v173
    %v206 = vunpack.c.l.b16 %v174
    %v207 = vunpack.c.l.b16 %v175
    %v208 = vpack.c.b16 %v193, %v192
    %v209 = vpack.c.b16 %v195, %v194
    %v210 = vpack.c.b16 %v197, %v196
    %v211 = vpack.c.b16 %v199, %v198
    %v212 = vpack.c.b16 %v201, %v200
    %v213 = vpack.c.b16 %v203, %v202
    %v214 = vpack.c.b16 %v205, %v204
    %v215 = vpack.c.b16 %v207, %v206
    %224 = vmatprep.subr.bf16.mxu0 0
    %225 = vmatpush1.bf16.msra.mxu0 %v215
    %226 = vmatprep.subr.bf16.mxu0 0
    %227 = vmatpush1.bf16.msra.mxu0 %v214
    %228 = vmatprep.subr.bf16.mxu0 0
    %229 = vmatpush1.bf16.msra.mxu0 %v213
    %230 = vmatprep.subr.bf16.mxu0 0
    %231 = vmatpush1.bf16.msra.mxu0 %v212
    %232 = vmatprep.subr.bf16.mxu0 0
    %233 = vmatpush1.bf16.msra.mxu0 %v211
    %234 = vmatprep.subr.bf16.mxu0 0
    %235 = vmatpush1.bf16.msra.mxu0 %v210
    %236 = vmatprep.subr.bf16.mxu0 0
    %237 = vmatpush1.bf16.msra.mxu0 %v209
    %238 = vmatprep.subr.bf16.mxu0 0
    %239 = vmatpush1.bf16.msra.mxu0 %v208
    %240 = vmatprep.subr.bf16.mxu0 0
    %241 = vmatpush2.bf16.msra.mxu0 0
    %242 = vmatprep.subr.bf16.mxu0 0
    %243 = vmatpush2.bf16.msra.mxu0 0
    %244 = vmatprep.subr.bf16.mxu0 0
    %245 = vmatpush2.bf16.msra.mxu0 0
    %246 = vmatprep.subr.bf16.mxu0 0
    %247 = vmatpush2.bf16.msra.mxu0 0
    %248 = vmatprep.subr.bf16.mxu0 0
    %249 = vmatpush2.bf16.msra.mxu0 0
    %250 = vmatprep.subr.bf16.mxu0 0
    %251 = vmatpush2.bf16.msra.mxu0 0
    %252 = vmatprep.subr.bf16.mxu0 0
    %253 = vmatpush2.bf16.msra.mxu0 0
    %254 = vmatprep.subr.bf16.mxu0 0
    %255 = vmatpush2.bf16.msra.mxu0 0
    %256 = vmatprep.mubr.bf16.mxu0 0
    %257 = vmatmul.mubr.bf16.gmra.mxu0 %v156
    %v258 = vpop.f32.mrf.mxu0
    %v259 = vadd.f32 0.0, %v258
    %v260 = vpop.f32.mrf.mxu0
    %v261 = vpop.f32.mrf.mxu0
    %v262 = vadd.f32 0.0, %v261
    %v263 = vpop.f32.mrf.mxu0
    %264 = vmatprep.mubr.bf16.mxu0 0
    %265 = vmatmul.mubr.bf16.gmra.mxu0 %v157
    %v266 = vpop.f32.mrf.mxu0
    %v267 = vadd.f32 0.0, %v266
    %v268 = vpop.f32.mrf.mxu0
    %v269 = vpop.f32.mrf.mxu0
    %v270 = vadd.f32 0.0, %v269
    %v271 = vpop.f32.mrf.mxu0
    %272 = vmatprep.mubr.bf16.mxu0 0
    %273 = vmatmul.mubr.bf16.gmra.mxu0 %v158
    %v274 = vpop.f32.mrf.mxu0
    %v275 = vadd.f32 0.0, %v274
    %v276 = vpop.f32.mrf.mxu0
    %v277 = vpop.f32.mrf.mxu0
    %v278 = vadd.f32 0.0, %v277
    %v279 = vpop.f32.mrf.mxu0
    %280 = vmatprep.mubr.bf16.mxu0 0
    %281 = vmatmul.mubr.bf16.gmra.mxu0 %v159
    %v282 = vpop.f32.mrf.mxu0
    %v283 = vadd.f32 0.0, %v282
    %v284 = vpop.f32.mrf.mxu0
    %v285 = vpop.f32.mrf.mxu0
    %v286 = vadd.f32 0.0, %v285
    %v287 = vpop.f32.mrf.mxu0
    %288 = vdwg.mxu0
    %v289 = vmul.f32 %v259, 0.01
    %v290 = vmul.f32 %v262, 0.01
    %v291 = vmul.f32 %v267, 0.01
    %v292 = vmul.f32 %v270, 0.01
    %v293 = vmul.f32 %v275, 0.01
    %v294 = vmul.f32 %v278, 0.01
    %v295 = vmul.f32 %v283, 0.01
    %v296 = vmul.f32 %v286, 0.01
    %v297 = vmax.f32 %v259, %v289
    %v298 = vmax.f32 %v262, %v290
    %v299 = vmax.f32 %v267, %v291
    %v300 = vmax.f32 %v270, %v292
    %v301 = vmax.f32 %v275, %v293
    %v302 = vmax.f32 %v278, %v294
    %v303 = vmax.f32 %v283, %v295
    %v304 = vmax.f32 %v286, %v296
    %v305 = vld [vmem:[#allocation4] sm:$0xf]
    %v306 = vld [vmem:[#allocation4 + $0x4] sm:$0xf]
    %v307 = vld [vmem:[#allocation4 + $0x8] sm:$0xf]
    %v308 = vld [vmem:[#allocation4 + $0xc] sm:$0xf]
    %v309 = vld [vmem:[#allocation4 + $0x10] sm:$0xf]
    %v310 = vld [vmem:[#allocation4 + $0x14] sm:$0xf]
    %v311 = vld [vmem:[#allocation4 + $0x18] sm:$0xf]
    %v312 = vld [vmem:[#allocation4 + $0x1c] sm:$0xf]
    %v313 = vld [vmem:[%s4] sm:$0x1]
    %v314 = vld [vmem:[%s5] sm:$0x1]
    %v315 = vadd.f32 %v297, %v298
    %v316 = vadd.f32 %v315, %v299
    %v317 = vadd.f32 %v316, %v300
    %v318 = vadd.f32 %v317, %v301
    %v319 = vadd.f32 %v318, %v302
    %v320 = vadd.f32 %v319, %v303
    %v321 = vadd.f32 %v320, %v304
    %v322 = vrot.slane %v321, 4
    %v323 = vadd.f32 %v321, %v322
    %v324 = vrot.slane %v323, 2
    %v325 = vadd.f32 %v323, %v324
    %v326 = vrot.slane %v325, 1
    %v327 = vadd.f32 %v325, %v326
    %v328 = vmul.f32 %v327, 0.015625
    %v329 = vsub.f32 %v297, %v328
    %v330 = vsub.f32 %v298, %v328
    %v331 = vsub.f32 %v299, %v328
    %v332 = vsub.f32 %v300, %v328
    %v333 = vsub.f32 %v301, %v328
    %v334 = vsub.f32 %v302, %v328
    %v335 = vsub.f32 %v303, %v328
    %v336 = vsub.f32 %v304, %v328
    %v337 = vmul.f32 %v329, %v329
    %v338 = vmul.f32 %v330, %v330
    %v339 = vmul.f32 %v331, %v331
    %v340 = vmul.f32 %v332, %v332
    %v341 = vmul.f32 %v333, %v333
    %v342 = vmul.f32 %v334, %v334
    %v343 = vmul.f32 %v335, %v335
    %v344 = vmul.f32 %v336, %v336
    %v345 = vadd.f32 %v337, %v338
    %v346 = vadd.f32 %v345, %v339
    %v347 = vadd.f32 %v346, %v340
    %v348 = vadd.f32 %v347, %v341
    %v349 = vadd.f32 %v348, %v342
    %v350 = vadd.f32 %v349, %v343
    %v351 = vadd.f32 %v350, %v344
    %v352 = vrot.slane %v351, 4
    %v353 = vadd.f32 %v351, %v352
    %v354 = vrot.slane %v353, 2
    %v355 = vadd.f32 %v353, %v354
    %v356 = vrot.slane %v355, 1
    %v357 = vadd.f32 %v355, %v356
    %v358 = vmul.f32 %v357, 0.015625
    %v359 = vadd.f32 %v358, 1e-05
    %v360 = vrsqrt.pop %v359
    %v361 = vmul.f32 %v329, %v360
    %v362 = vmul.f32 %v330, %v360
    %v363 = vmul.f32 %v331, %v360
    %v364 = vmul.f32 %v332, %v360
    %v365 = vmul.f32 %v333, %v360
    %v366 = vmul.f32 %v334, %v360
    %v367 = vmul.f32 %v335, %v360
    %v368 = vmul.f32 %v336, %v360
    %v370 = vlaneseq
    %v371 = vshrl.u32 %v370, 7
    %v372 = vsub.s32 0, %v371
    %v373 = vrot.slane %v313, %v372
    %v375 = vmul.f32 %v361, %v373
    %v376 = vmul.f32 %v362, %v373
    %v377 = vmul.f32 %v363, %v373
    %v378 = vmul.f32 %v364, %v373
    %v379 = vmul.f32 %v365, %v373
    %v380 = vmul.f32 %v366, %v373
    %v381 = vmul.f32 %v367, %v373
    %v382 = vmul.f32 %v368, %v373
    %v384 = vlaneseq
    %v385 = vshrl.u32 %v384, 7
    %v386 = vsub.s32 0, %v385
    %v387 = vrot.slane %v314, %v386
    %v389 = vadd.f32 %v375, %v387
    %v390 = vadd.f32 %v376, %v387
    %v391 = vadd.f32 %v377, %v387
    %v392 = vadd.f32 %v378, %v387
    %v393 = vadd.f32 %v379, %v387
    %v394 = vadd.f32 %v380, %v387
    %v395 = vadd.f32 %v381, %v387
    %v396 = vadd.f32 %v382, %v387
    %v397 = vpack.c.bf16 %v390, %v389
    %v398 = vpack.c.bf16 %v392, %v391
    %v399 = vpack.c.bf16 %v394, %v393
    %v400 = vpack.c.bf16 %v396, %v395
    %v401 = vld [vmem:[%s6] sm:$0xf]
    %v402 = vld [vmem:[%s6 + $0x4] sm:$0xf]
    %v403 = vld [vmem:[%s6 + $0x8] sm:$0xf]
    %v404 = vld [vmem:[%s6 + $0xc] sm:$0xf]
    %v405 = vld [vmem:[%s6 + $0x10] sm:$0xf]
    %v406 = vld [vmem:[%s6 + $0x14] sm:$0xf]
    %v407 = vld [vmem:[%s6 + $0x18] sm:$0xf]
    %v408 = vld [vmem:[%s6 + $0x1c] sm:$0xf]
    %v409 = vld [vmem:[%s6 + $0x20] sm:$0xf]
    %v410 = vld [vmem:[%s6 + $0x24] sm:$0xf]
    %v411 = vld [vmem:[%s6 + $0x28] sm:$0xf]
    %v412 = vld [vmem:[%s6 + $0x2c] sm:$0xf]
    %v413 = vld [vmem:[%s6 + $0x30] sm:$0xf]
    %v414 = vld [vmem:[%s6 + $0x34] sm:$0xf]
    %v415 = vld [vmem:[%s6 + $0x38] sm:$0xf]
    %v416 = vld [vmem:[%s6 + $0x3c] sm:$0xf]
    %v433 = vunpack.c.l.b16 %v401
    %v434 = vunpack.c.l.b16 %v402
    %v435 = vunpack.c.l.b16 %v403
    %v436 = vunpack.c.l.b16 %v404
    %v437 = vunpack.c.l.b16 %v405
    %v438 = vunpack.c.l.b16 %v406
    %v439 = vunpack.c.l.b16 %v407
    %v440 = vunpack.c.l.b16 %v408
    %v441 = vunpack.c.l.b16 %v409
    %v442 = vunpack.c.l.b16 %v410
    %v443 = vunpack.c.l.b16 %v411
    %v444 = vunpack.c.l.b16 %v412
    %v445 = vunpack.c.l.b16 %v413
    %v446 = vunpack.c.l.b16 %v414
    %v447 = vunpack.c.l.b16 %v415
    %v448 = vunpack.c.l.b16 %v416
    %v449 = vpack.c.b16 %v434, %v433
    %v450 = vpack.c.b16 %v436, %v435
    %v451 = vpack.c.b16 %v438, %v437
    %v452 = vpack.c.b16 %v440, %v439
    %v453 = vpack.c.b16 %v442, %v441
    %v454 = vpack.c.b16 %v444, %v443
    %v455 = vpack.c.b16 %v446, %v445
    %v456 = vpack.c.b16 %v448, %v447
    %465 = vmatprep.subr.bf16.mxu0 0
    %466 = vmatpush1.bf16.msra.mxu0 %v456
    %467 = vmatprep.subr.bf16.mxu0 0
    %468 = vmatpush1.bf16.msra.mxu0 %v455
    %469 = vmatprep.subr.bf16.mxu0 0
    %470 = vmatpush1.bf16.msra.mxu0 %v454
    %471 = vmatprep.subr.bf16.mxu0 0
    %472 = vmatpush1.bf16.msra.mxu0 %v453
    %473 = vmatprep.subr.bf16.mxu0 0
    %474 = vmatpush1.bf16.msra.mxu0 %v452
    %475 = vmatprep.subr.bf16.mxu0 0
    %476 = vmatpush1.bf16.msra.mxu0 %v451
    %477 = vmatprep.subr.bf16.mxu0 0
    %478 = vmatpush1.bf16.msra.mxu0 %v450
    %479 = vmatprep.subr.bf16.mxu0 0
    %480 = vmatpush1.bf16.msra.mxu0 %v449
    %481 = vmatprep.subr.bf16.mxu0 0
    %482 = vmatpush2.bf16.msra.mxu0 0
    %483 = vmatprep.subr.bf16.mxu0 0
    %484 = vmatpush2.bf16.msra.mxu0 0
    %485 = vmatprep.subr.bf16.mxu0 0
    %486 = vmatpush2.bf16.msra.mxu0 0
    %487 = vmatprep.subr.bf16.mxu0 0
    %488 = vmatpush2.bf16.msra.mxu0 0
    %489 = vmatprep.subr.bf16.mxu0 0
    %490 = vmatpush2.bf16.msra.mxu0 0
    %491 = vmatprep.subr.bf16.mxu0 0
    %492 = vmatpush2.bf16.msra.mxu0 0
    %493 = vmatprep.subr.bf16.mxu0 0
    %494 = vmatpush2.bf16.msra.mxu0 0
    %495 = vmatprep.subr.bf16.mxu0 0
    %496 = vmatpush2.bf16.msra.mxu0 0
    %497 = vmatprep.mubr.bf16.mxu0 0
    %498 = vmatmul.mubr.bf16.gmra.mxu0 %v397
    %v499 = vpop.f32.mrf.mxu0
    %v500 = vadd.f32 0.0, %v499
    %v501 = vpop.f32.mrf.mxu0
    %v502 = vpop.f32.mrf.mxu0
    %v503 = vadd.f32 0.0, %v502
    %v504 = vpop.f32.mrf.mxu0
    %505 = vmatprep.mubr.bf16.mxu0 0
    %506 = vmatmul.mubr.bf16.gmra.mxu0 %v398
    %v507 = vpop.f32.mrf.mxu0
    %v508 = vadd.f32 0.0, %v507
    %v509 = vpop.f32.mrf.mxu0
    %v510 = vpop.f32.mrf.mxu0
    %v511 = vadd.f32 0.0, %v510
    %v512 = vpop.f32.mrf.mxu0
    %513 = vmatprep.mubr.bf16.mxu0 0
    %514 = vmatmul.mubr.bf16.gmra.mxu0 %v399
    %v515 = vpop.f32.mrf.mxu0
    %v516 = vadd.f32 0.0, %v515
    %v517 = vpop.f32.mrf.mxu0
    %v518 = vpop.f32.mrf.mxu0
    %v519 = vadd.f32 0.0, %v518
    %v520 = vpop.f32.mrf.mxu0
    %521 = vmatprep.mubr.bf16.mxu0 0
    %522 = vmatmul.mubr.bf16.gmra.mxu0 %v400
    %v523 = vpop.f32.mrf.mxu0
    %v524 = vadd.f32 0.0, %v523
    %v525 = vpop.f32.mrf.mxu0
    %v526 = vpop.f32.mrf.mxu0
    %v527 = vadd.f32 0.0, %v526
    %v528 = vpop.f32.mrf.mxu0
    %529 = vdwg.mxu0
    %v530 = vpack.c.bf16 %v503, %v500
    %v531 = vpack.c.bf16 %v511, %v508
    %v532 = vpack.c.bf16 %v519, %v516
    %v533 = vpack.c.bf16 %v527, %v524
    %v534 = vld [vmem:[%s7] sm:$0x1]
    %v536 = vlaneseq
    %v537 = vshrl.u32 %v536, 7
    %v538 = vsub.s32 0, %v537
    %v539 = vrot.slane %v534, %v538
    %v549 = vunpack.c.l.b16 %v305
    %v550 = vunpack.c.l.b16 %v306
    %v551 = vunpack.c.l.b16 %v307
    %v552 = vunpack.c.l.b16 %v308
    %v553 = vunpack.c.l.b16 %v309
    %v554 = vunpack.c.l.b16 %v310
    %v555 = vunpack.c.l.b16 %v311
    %v556 = vunpack.c.l.b16 %v312
    %v557 = vpack.c.b16 %v550, %v549
    %v558 = vpack.c.b16 %v552, %v551
    %v559 = vpack.c.b16 %v554, %v553
    %v560 = vpack.c.b16 %v556, %v555
    %vm561 = vcmask 523264
    %v563 = vsel %vm561, %v557, 0
    %v566 = vsel %vm561, %v558, 0
    %v569 = vsel %vm561, %v559, 0
    %v572 = vsel %vm561, %v560, 0
    %574 = vmatprep.subr.bf16.mxu0 0
    %575 = vmatpush1.bf16.msra.mxu0 0
    %576 = vmatprep.subr.bf16.mxu0 0
    %577 = vmatpush1.bf16.msra.mxu0 0
    %578 = vmatprep.subr.bf16.mxu0 0
    %579 = vmatpush1.bf16.msra.mxu0 0
    %580 = vmatprep.subr.bf16.mxu0 0
    %581 = vmatpush1.bf16.msra.mxu0 0
    %582 = vmatprep.subr.bf16.mxu0 0
    %583 = vmatpush1.bf16.msra.mxu0 %v533
    %584 = vmatprep.subr.bf16.mxu0 0
    %585 = vmatpush1.bf16.msra.mxu0 %v532
    %586 = vmatprep.subr.bf16.mxu0 0
    %587 = vmatpush1.bf16.msra.mxu0 %v531
    %588 = vmatprep.subr.bf16.mxu0 0
    %589 = vmatpush1.bf16.msra.mxu0 %v530
    %590 = vmatprep.subr.bf16.mxu0 0
    %591 = vmatpush2.bf16.msra.mxu0 0
    %592 = vmatprep.subr.bf16.mxu0 0
    %593 = vmatpush2.bf16.msra.mxu0 0
    %594 = vmatprep.subr.bf16.mxu0 0
    %595 = vmatpush2.bf16.msra.mxu0 0
    %596 = vmatprep.subr.bf16.mxu0 0
    %597 = vmatpush2.bf16.msra.mxu0 0
    %598 = vmatprep.subr.bf16.mxu0 0
    %599 = vmatpush2.bf16.msra.mxu0 0
    %600 = vmatprep.subr.bf16.mxu0 0
    %601 = vmatpush2.bf16.msra.mxu0 0
    %602 = vmatprep.subr.bf16.mxu0 0
    %603 = vmatpush2.bf16.msra.mxu0 0
    %604 = vmatprep.subr.bf16.mxu0 0
    %605 = vmatpush2.bf16.msra.mxu0 0
    %606 = vmatprep.mubr.bf16.mxu0 0
    %607 = vmatmul.mubr.bf16.gmra.mxu0 %v563
    %v608 = vpop.f32.mrf.mxu0
    %v609 = vadd.f32 %v539, %v608
    %v610 = vpop.f32.mrf.mxu0
    %v611 = vpop.f32.mrf.mxu0
    %v612 = vadd.f32 %v539, %v611
    %v613 = vpop.f32.mrf.mxu0
    %614 = vmatprep.mubr.bf16.mxu0 0
    %615 = vmatmul.mubr.bf16.gmra.mxu0 %v566
    %v616 = vpop.f32.mrf.mxu0
    %v617 = vadd.f32 %v539, %v616
    %v618 = vpop.f32.mrf.mxu0
    %v619 = vpop.f32.mrf.mxu0
    %v620 = vadd.f32 %v539, %v619
    %v621 = vpop.f32.mrf.mxu0
    %622 = vmatprep.mubr.bf16.mxu0 0
    %623 = vmatmul.mubr.bf16.gmra.mxu0 %v569
    %v624 = vpop.f32.mrf.mxu0
    %v625 = vadd.f32 %v539, %v624
    %v626 = vpop.f32.mrf.mxu0
    %v627 = vpop.f32.mrf.mxu0
    %v628 = vadd.f32 %v539, %v627
    %v629 = vpop.f32.mrf.mxu0
    %630 = vmatprep.mubr.bf16.mxu0 0
    %631 = vmatmul.mubr.bf16.gmra.mxu0 %v572
    %v632 = vpop.f32.mrf.mxu0
    %v633 = vadd.f32 %v539, %v632
    %v634 = vpop.f32.mrf.mxu0
    %v635 = vpop.f32.mrf.mxu0
    %v636 = vadd.f32 %v539, %v635
    %v637 = vpop.f32.mrf.mxu0
    %638 = vdwg.mxu0
    %v639 = vmul.f32 %v609, 0.01
    %v640 = vmul.f32 %v612, 0.01
    %v641 = vmul.f32 %v617, 0.01
    %v642 = vmul.f32 %v620, 0.01
    %v643 = vmul.f32 %v625, 0.01
    %v644 = vmul.f32 %v628, 0.01
    %v645 = vmul.f32 %v633, 0.01
    %v646 = vmul.f32 %v636, 0.01
    %v647 = vmax.f32 %v609, %v639
    %v648 = vmax.f32 %v612, %v640
    %v649 = vmax.f32 %v617, %v641
    %v650 = vmax.f32 %v620, %v642
    %v651 = vmax.f32 %v625, %v643
    %v652 = vmax.f32 %v628, %v644
    %v653 = vmax.f32 %v633, %v645
    %v654 = vmax.f32 %v636, %v646
    %s655 = scalar_lea.vmem %s4, 1
    %v656 = vld [vmem:[%s655] sm:$0x1]
    %s657 = scalar_lea.vmem %s5, 1
    %v658 = vld [vmem:[%s657] sm:$0x1]
    %v659 = vadd.f32 %v647, %v648
    %v660 = vadd.f32 %v659, %v649
    %v661 = vadd.f32 %v660, %v650
    %v662 = vadd.f32 %v661, %v651
    %v663 = vadd.f32 %v662, %v652
    %v664 = vadd.f32 %v663, %v653
    %v665 = vadd.f32 %v664, %v654
    %v666 = vrot.slane %v665, 4
    %v667 = vadd.f32 %v665, %v666
    %v668 = vrot.slane %v667, 2
    %v669 = vadd.f32 %v667, %v668
    %v670 = vrot.slane %v669, 1
    %v671 = vadd.f32 %v669, %v670
    %v672 = vmul.f32 %v671, 0.015625
    %v673 = vsub.f32 %v647, %v672
    %v674 = vsub.f32 %v648, %v672
    %v675 = vsub.f32 %v649, %v672
    %v676 = vsub.f32 %v650, %v672
    %v677 = vsub.f32 %v651, %v672
    %v678 = vsub.f32 %v652, %v672
    %v679 = vsub.f32 %v653, %v672
    %v680 = vsub.f32 %v654, %v672
    %v681 = vmul.f32 %v673, %v673
    %v682 = vmul.f32 %v674, %v674
    %v683 = vmul.f32 %v675, %v675
    %v684 = vmul.f32 %v676, %v676
    %v685 = vmul.f32 %v677, %v677
    %v686 = vmul.f32 %v678, %v678
    %v687 = vmul.f32 %v679, %v679
    %v688 = vmul.f32 %v680, %v680
    %v689 = vadd.f32 %v681, %v682
    %v690 = vadd.f32 %v689, %v683
    %v691 = vadd.f32 %v690, %v684
    %v692 = vadd.f32 %v691, %v685
    %v693 = vadd.f32 %v692, %v686
    %v694 = vadd.f32 %v693, %v687
    %v695 = vadd.f32 %v694, %v688
    %v696 = vrot.slane %v695, 4
    %v697 = vadd.f32 %v695, %v696
    %v698 = vrot.slane %v697, 2
    %v699 = vadd.f32 %v697, %v698
    %v700 = vrot.slane %v699, 1
    %v701 = vadd.f32 %v699, %v700
    %v702 = vmul.f32 %v701, 0.015625
    %v703 = vadd.f32 %v702, 1e-05
    %v704 = vrsqrt.pop %v703
    %v705 = vmul.f32 %v673, %v704
    %v706 = vmul.f32 %v674, %v704
    %v707 = vmul.f32 %v675, %v704
    %v708 = vmul.f32 %v676, %v704
    %v709 = vmul.f32 %v677, %v704
    %v710 = vmul.f32 %v678, %v704
    %v711 = vmul.f32 %v679, %v704
    %v712 = vmul.f32 %v680, %v704
    %v714 = vlaneseq
    %v715 = vshrl.u32 %v714, 7
    %v716 = vsub.s32 0, %v715
    %v717 = vrot.slane %v656, %v716
    %v719 = vmul.f32 %v705, %v717
    %v720 = vmul.f32 %v706, %v717
    %v721 = vmul.f32 %v707, %v717
    %v722 = vmul.f32 %v708, %v717
    %v723 = vmul.f32 %v709, %v717
    %v724 = vmul.f32 %v710, %v717
    %v725 = vmul.f32 %v711, %v717
    %v726 = vmul.f32 %v712, %v717
    %v728 = vlaneseq
    %v729 = vshrl.u32 %v728, 7
    %v730 = vsub.s32 0, %v729
    %v731 = vrot.slane %v658, %v730
    %v733 = vadd.f32 %v719, %v731
    %v734 = vadd.f32 %v720, %v731
    %v735 = vadd.f32 %v721, %v731
    %v736 = vadd.f32 %v722, %v731
    %v737 = vadd.f32 %v723, %v731
    %v738 = vadd.f32 %v724, %v731
    %v739 = vadd.f32 %v725, %v731
    %v740 = vadd.f32 %v726, %v731
    %v741 = vpack.c.bf16 %v734, %v733
    %v742 = vpack.c.bf16 %v736, %v735
    %v743 = vpack.c.bf16 %v738, %v737
    %v744 = vpack.c.bf16 %v740, %v739
    %s745 = scalar_lea.vmem %s6, 64
    %v746 = vld [vmem:[%s745] sm:$0xf]
    %v747 = vld [vmem:[%s745 + $0x4] sm:$0xf]
    %v748 = vld [vmem:[%s745 + $0x8] sm:$0xf]
    %v749 = vld [vmem:[%s745 + $0xc] sm:$0xf]
    %v750 = vld [vmem:[%s745 + $0x10] sm:$0xf]
    %v751 = vld [vmem:[%s745 + $0x14] sm:$0xf]
    %v752 = vld [vmem:[%s745 + $0x18] sm:$0xf]
    %v753 = vld [vmem:[%s745 + $0x1c] sm:$0xf]
    %v754 = vld [vmem:[%s745 + $0x20] sm:$0xf]
    %v755 = vld [vmem:[%s745 + $0x24] sm:$0xf]
    %v756 = vld [vmem:[%s745 + $0x28] sm:$0xf]
    %v757 = vld [vmem:[%s745 + $0x2c] sm:$0xf]
    %v758 = vld [vmem:[%s745 + $0x30] sm:$0xf]
    %v759 = vld [vmem:[%s745 + $0x34] sm:$0xf]
    %v760 = vld [vmem:[%s745 + $0x38] sm:$0xf]
    %v761 = vld [vmem:[%s745 + $0x3c] sm:$0xf]
    %v778 = vunpack.c.l.b16 %v746
    %v779 = vunpack.c.l.b16 %v747
    %v780 = vunpack.c.l.b16 %v748
    %v781 = vunpack.c.l.b16 %v749
    %v782 = vunpack.c.l.b16 %v750
    %v783 = vunpack.c.l.b16 %v751
    %v784 = vunpack.c.l.b16 %v752
    %v785 = vunpack.c.l.b16 %v753
    %v786 = vunpack.c.l.b16 %v754
    %v787 = vunpack.c.l.b16 %v755
    %v788 = vunpack.c.l.b16 %v756
    %v789 = vunpack.c.l.b16 %v757
    %v790 = vunpack.c.l.b16 %v758
    %v791 = vunpack.c.l.b16 %v759
    %v792 = vunpack.c.l.b16 %v760
    %v793 = vunpack.c.l.b16 %v761
    %v794 = vpack.c.b16 %v779, %v778
    %v795 = vpack.c.b16 %v781, %v780
    %v796 = vpack.c.b16 %v783, %v782
    %v797 = vpack.c.b16 %v785, %v784
    %v798 = vpack.c.b16 %v787, %v786
    %v799 = vpack.c.b16 %v789, %v788
    %v800 = vpack.c.b16 %v791, %v790
    %v801 = vpack.c.b16 %v793, %v792
    %810 = vmatprep.subr.bf16.mxu0 0
    %811 = vmatpush1.bf16.msra.mxu0 %v801
    %812 = vmatprep.subr.bf16.mxu0 0
    %813 = vmatpush1.bf16.msra.mxu0 %v800
    %814 = vmatprep.subr.bf16.mxu0 0
    %815 = vmatpush1.bf16.msra.mxu0 %v799
    %816 = vmatprep.subr.bf16.mxu0 0
    %817 = vmatpush1.bf16.msra.mxu0 %v798
    %818 = vmatprep.subr.bf16.mxu0 0
    %819 = vmatpush1.bf16.msra.mxu0 %v797
    %820 = vmatprep.subr.bf16.mxu0 0
    %821 = vmatpush1.bf16.msra.mxu0 %v796
    %822 = vmatprep.subr.bf16.mxu0 0
    %823 = vmatpush1.bf16.msra.mxu0 %v795
    %824 = vmatprep.subr.bf16.mxu0 0
    %825 = vmatpush1.bf16.msra.mxu0 %v794
    %826 = vmatprep.subr.bf16.mxu0 0
    %827 = vmatpush2.bf16.msra.mxu0 0
    %828 = vmatprep.subr.bf16.mxu0 0
    %829 = vmatpush2.bf16.msra.mxu0 0
    %830 = vmatprep.subr.bf16.mxu0 0
    %831 = vmatpush2.bf16.msra.mxu0 0
    %832 = vmatprep.subr.bf16.mxu0 0
    %833 = vmatpush2.bf16.msra.mxu0 0
    %834 = vmatprep.subr.bf16.mxu0 0
    %835 = vmatpush2.bf16.msra.mxu0 0
    %836 = vmatprep.subr.bf16.mxu0 0
    %837 = vmatpush2.bf16.msra.mxu0 0
    %838 = vmatprep.subr.bf16.mxu0 0
    %839 = vmatpush2.bf16.msra.mxu0 0
    %840 = vmatprep.subr.bf16.mxu0 0
    %841 = vmatpush2.bf16.msra.mxu0 0
    %842 = vmatprep.mubr.bf16.mxu0 0
    %843 = vmatmul.mubr.bf16.gmra.mxu0 %v741
    %v844 = vpop.f32.mrf.mxu0
    %v845 = vadd.f32 0.0, %v844
    %v846 = vpop.f32.mrf.mxu0
    %v847 = vpop.f32.mrf.mxu0
    %v848 = vadd.f32 0.0, %v847
    %v849 = vpop.f32.mrf.mxu0
    %850 = vmatprep.mubr.bf16.mxu0 0
    %851 = vmatmul.mubr.bf16.gmra.mxu0 %v742
    %v852 = vpop.f32.mrf.mxu0
    %v853 = vadd.f32 0.0, %v852
    %v854 = vpop.f32.mrf.mxu0
    %v855 = vpop.f32.mrf.mxu0
    %v856 = vadd.f32 0.0, %v855
    %v857 = vpop.f32.mrf.mxu0
    %858 = vmatprep.mubr.bf16.mxu0 0
    %859 = vmatmul.mubr.bf16.gmra.mxu0 %v743
    %v860 = vpop.f32.mrf.mxu0
    %v861 = vadd.f32 0.0, %v860
    %v862 = vpop.f32.mrf.mxu0
    %v863 = vpop.f32.mrf.mxu0
    %v864 = vadd.f32 0.0, %v863
    %v865 = vpop.f32.mrf.mxu0
    %866 = vmatprep.mubr.bf16.mxu0 0
    %867 = vmatmul.mubr.bf16.gmra.mxu0 %v744
    %v868 = vpop.f32.mrf.mxu0
    %v869 = vadd.f32 0.0, %v868
    %v870 = vpop.f32.mrf.mxu0
    %v871 = vpop.f32.mrf.mxu0
    %v872 = vadd.f32 0.0, %v871
    %v873 = vpop.f32.mrf.mxu0
    %874 = vdwg.mxu0
    %v875 = vpack.c.bf16 %v848, %v845
    %v876 = vpack.c.bf16 %v856, %v853
    %v877 = vpack.c.bf16 %v864, %v861
    %v878 = vpack.c.bf16 %v872, %v869
    %s879 = scalar_lea.vmem %s7, 1
    %v880 = vld [vmem:[%s879] sm:$0x1]
    %v882 = vlaneseq
    %v883 = vshrl.u32 %v882, 7
    %v884 = vsub.s32 0, %v883
    %v885 = vrot.slane %v880, %v884
    %887 = vmatprep.subr.bf16.mxu0 0
    %888 = vmatpush1.bf16.msra.mxu0 0
    %889 = vmatprep.subr.bf16.mxu0 0
    %890 = vmatpush1.bf16.msra.mxu0 0
    %891 = vmatprep.subr.bf16.mxu0 0
    %892 = vmatpush1.bf16.msra.mxu0 0
    %893 = vmatprep.subr.bf16.mxu0 0
    %894 = vmatpush1.bf16.msra.mxu0 0
    %895 = vmatprep.subr.bf16.mxu0 0
    %896 = vmatpush1.bf16.msra.mxu0 %v878
    %897 = vmatprep.subr.bf16.mxu0 0
    %898 = vmatpush1.bf16.msra.mxu0 %v877
    %899 = vmatprep.subr.bf16.mxu0 0
    %900 = vmatpush1.bf16.msra.mxu0 %v876
    %901 = vmatprep.subr.bf16.mxu0 0
    %902 = vmatpush1.bf16.msra.mxu0 %v875
    %903 = vmatprep.subr.bf16.mxu0 0
    %904 = vmatpush2.bf16.msra.mxu0 0
    %905 = vmatprep.subr.bf16.mxu0 0
    %906 = vmatpush2.bf16.msra.mxu0 0
    %907 = vmatprep.subr.bf16.mxu0 0
    %908 = vmatpush2.bf16.msra.mxu0 0
    %909 = vmatprep.subr.bf16.mxu0 0
    %910 = vmatpush2.bf16.msra.mxu0 0
    %911 = vmatprep.subr.bf16.mxu0 0
    %912 = vmatpush2.bf16.msra.mxu0 0
    %913 = vmatprep.subr.bf16.mxu0 0
    %914 = vmatpush2.bf16.msra.mxu0 0
    %915 = vmatprep.subr.bf16.mxu0 0
    %916 = vmatpush2.bf16.msra.mxu0 0
    %917 = vmatprep.subr.bf16.mxu0 0
    %918 = vmatpush2.bf16.msra.mxu0 0
    %919 = vmatprep.mubr.bf16.mxu0 0
    %920 = vmatmul.mubr.bf16.gmra.mxu0 %v563
    %v921 = vpop.f32.mrf.mxu0
    %v922 = vadd.f32 %v885, %v921
    %v923 = vpop.f32.mrf.mxu0
    %v924 = vpop.f32.mrf.mxu0
    %v925 = vadd.f32 %v885, %v924
    %v926 = vpop.f32.mrf.mxu0
    %927 = vmatprep.mubr.bf16.mxu0 0
    %928 = vmatmul.mubr.bf16.gmra.mxu0 %v566
    %v929 = vpop.f32.mrf.mxu0
    %v930 = vadd.f32 %v885, %v929
    %v931 = vpop.f32.mrf.mxu0
    %v932 = vpop.f32.mrf.mxu0
    %v933 = vadd.f32 %v885, %v932
    %v934 = vpop.f32.mrf.mxu0
    %935 = vmatprep.mubr.bf16.mxu0 0
    %936 = vmatmul.mubr.bf16.gmra.mxu0 %v569
    %v937 = vpop.f32.mrf.mxu0
    %v938 = vadd.f32 %v885, %v937
    %v939 = vpop.f32.mrf.mxu0
    %v940 = vpop.f32.mrf.mxu0
    %v941 = vadd.f32 %v885, %v940
    %v942 = vpop.f32.mrf.mxu0
    %943 = vmatprep.mubr.bf16.mxu0 0
    %944 = vmatmul.mubr.bf16.gmra.mxu0 %v572
    %v945 = vpop.f32.mrf.mxu0
    %v946 = vadd.f32 %v885, %v945
    %v947 = vpop.f32.mrf.mxu0
    %v948 = vpop.f32.mrf.mxu0
    %v949 = vadd.f32 %v885, %v948
    %v950 = vpop.f32.mrf.mxu0
    %951 = vdwg.mxu0
    %v952 = vmul.f32 %v922, 0.01
    %v953 = vmul.f32 %v925, 0.01
    %v954 = vmul.f32 %v930, 0.01
    %v955 = vmul.f32 %v933, 0.01
    %v956 = vmul.f32 %v938, 0.01
    %v957 = vmul.f32 %v941, 0.01
    %v958 = vmul.f32 %v946, 0.01
    %v959 = vmul.f32 %v949, 0.01
    %v960 = vmax.f32 %v922, %v952
    %v961 = vmax.f32 %v925, %v953
    %v962 = vmax.f32 %v930, %v954
    %v963 = vmax.f32 %v933, %v955
    %v964 = vmax.f32 %v938, %v956
    %v965 = vmax.f32 %v941, %v957
    %v966 = vmax.f32 %v946, %v958
    %v967 = vmax.f32 %v949, %v959
    %s968 = scalar_lea.vmem %s4, 2
    %v969 = vld [vmem:[%s968] sm:$0x1]
    %s970 = scalar_lea.vmem %s5, 2
    %v971 = vld [vmem:[%s970] sm:$0x1]
    %v972 = vadd.f32 %v960, %v961
    %v973 = vadd.f32 %v972, %v962
    %v974 = vadd.f32 %v973, %v963
    %v975 = vadd.f32 %v974, %v964
    %v976 = vadd.f32 %v975, %v965
    %v977 = vadd.f32 %v976, %v966
    %v978 = vadd.f32 %v977, %v967
    %v979 = vrot.slane %v978, 4
    %v980 = vadd.f32 %v978, %v979
    %v981 = vrot.slane %v980, 2
    %v982 = vadd.f32 %v980, %v981
    %v983 = vrot.slane %v982, 1
    %v984 = vadd.f32 %v982, %v983
    %v985 = vmul.f32 %v984, 0.015625
    %v986 = vsub.f32 %v960, %v985
    %v987 = vsub.f32 %v961, %v985
    %v988 = vsub.f32 %v962, %v985
    %v989 = vsub.f32 %v963, %v985
    %v990 = vsub.f32 %v964, %v985
    %v991 = vsub.f32 %v965, %v985
    %v992 = vsub.f32 %v966, %v985
    %v993 = vsub.f32 %v967, %v985
    %v994 = vmul.f32 %v986, %v986
    %v995 = vmul.f32 %v987, %v987
    %v996 = vmul.f32 %v988, %v988
    %v997 = vmul.f32 %v989, %v989
    %v998 = vmul.f32 %v990, %v990
    %v999 = vmul.f32 %v991, %v991
    %v1000 = vmul.f32 %v992, %v992
    %v1001 = vmul.f32 %v993, %v993
    %v1002 = vadd.f32 %v994, %v995
    %v1003 = vadd.f32 %v1002, %v996
    %v1004 = vadd.f32 %v1003, %v997
    %v1005 = vadd.f32 %v1004, %v998
    %v1006 = vadd.f32 %v1005, %v999
    %v1007 = vadd.f32 %v1006, %v1000
    %v1008 = vadd.f32 %v1007, %v1001
    %v1009 = vrot.slane %v1008, 4
    %v1010 = vadd.f32 %v1008, %v1009
    %v1011 = vrot.slane %v1010, 2
    %v1012 = vadd.f32 %v1010, %v1011
    %v1013 = vrot.slane %v1012, 1
    %v1014 = vadd.f32 %v1012, %v1013
    %v1015 = vmul.f32 %v1014, 0.015625
    %v1016 = vadd.f32 %v1015, 1e-05
    %v1017 = vrsqrt.pop %v1016
    %v1018 = vmul.f32 %v986, %v1017
    %v1019 = vmul.f32 %v987, %v1017
    %v1020 = vmul.f32 %v988, %v1017
    %v1021 = vmul.f32 %v989, %v1017
    %v1022 = vmul.f32 %v990, %v1017
    %v1023 = vmul.f32 %v991, %v1017
    %v1024 = vmul.f32 %v992, %v1017
    %v1025 = vmul.f32 %v993, %v1017
    %v1027 = vlaneseq
    %v1028 = vshrl.u32 %v1027, 7
    %v1029 = vsub.s32 0, %v1028
    %v1030 = vrot.slane %v969, %v1029
    %v1032 = vmul.f32 %v1018, %v1030
    %v1033 = vmul.f32 %v1019, %v1030
    %v1034 = vmul.f32 %v1020, %v1030
    %v1035 = vmul.f32 %v1021, %v1030
    %v1036 = vmul.f32 %v1022, %v1030
    %v1037 = vmul.f32 %v1023, %v1030
    %v1038 = vmul.f32 %v1024, %v1030
    %v1039 = vmul.f32 %v1025, %v1030
    %v1041 = vlaneseq
    %v1042 = vshrl.u32 %v1041, 7
    %v1043 = vsub.s32 0, %v1042
    %v1044 = vrot.slane %v971, %v1043
    %v1046 = vadd.f32 %v1032, %v1044
    %v1047 = vadd.f32 %v1033, %v1044
    %v1048 = vadd.f32 %v1034, %v1044
    %v1049 = vadd.f32 %v1035, %v1044
    %v1050 = vadd.f32 %v1036, %v1044
    %v1051 = vadd.f32 %v1037, %v1044
    %v1052 = vadd.f32 %v1038, %v1044
    %v1053 = vadd.f32 %v1039, %v1044
    %v1054 = vpack.c.bf16 %v1047, %v1046
    %v1055 = vpack.c.bf16 %v1049, %v1048
    %v1056 = vpack.c.bf16 %v1051, %v1050
    %v1057 = vpack.c.bf16 %v1053, %v1052
    %s1058 = scalar_lea.vmem %s6, 128
    %v1059 = vld [vmem:[%s1058] sm:$0xf]
    %v1060 = vld [vmem:[%s1058 + $0x4] sm:$0xf]
    %v1061 = vld [vmem:[%s1058 + $0x8] sm:$0xf]
    %v1062 = vld [vmem:[%s1058 + $0xc] sm:$0xf]
    %v1063 = vld [vmem:[%s1058 + $0x10] sm:$0xf]
    %v1064 = vld [vmem:[%s1058 + $0x14] sm:$0xf]
    %v1065 = vld [vmem:[%s1058 + $0x18] sm:$0xf]
    %v1066 = vld [vmem:[%s1058 + $0x1c] sm:$0xf]
    %v1067 = vld [vmem:[%s1058 + $0x20] sm:$0xf]
    %v1068 = vld [vmem:[%s1058 + $0x24] sm:$0xf]
    %v1069 = vld [vmem:[%s1058 + $0x28] sm:$0xf]
    %v1070 = vld [vmem:[%s1058 + $0x2c] sm:$0xf]
    %v1071 = vld [vmem:[%s1058 + $0x30] sm:$0xf]
    %v1072 = vld [vmem:[%s1058 + $0x34] sm:$0xf]
    %v1073 = vld [vmem:[%s1058 + $0x38] sm:$0xf]
    %v1074 = vld [vmem:[%s1058 + $0x3c] sm:$0xf]
    %v1091 = vunpack.c.l.b16 %v1059
    %v1092 = vunpack.c.l.b16 %v1060
    %v1093 = vunpack.c.l.b16 %v1061
    %v1094 = vunpack.c.l.b16 %v1062
    %v1095 = vunpack.c.l.b16 %v1063
    %v1096 = vunpack.c.l.b16 %v1064
    %v1097 = vunpack.c.l.b16 %v1065
    %v1098 = vunpack.c.l.b16 %v1066
    %v1099 = vunpack.c.l.b16 %v1067
    %v1100 = vunpack.c.l.b16 %v1068
    %v1101 = vunpack.c.l.b16 %v1069
    %v1102 = vunpack.c.l.b16 %v1070
    %v1103 = vunpack.c.l.b16 %v1071
    %v1104 = vunpack.c.l.b16 %v1072
    %v1105 = vunpack.c.l.b16 %v1073
    %v1106 = vunpack.c.l.b16 %v1074
    %v1107 = vpack.c.b16 %v1092, %v1091
    %v1108 = vpack.c.b16 %v1094, %v1093
    %v1109 = vpack.c.b16 %v1096, %v1095
    %v1110 = vpack.c.b16 %v1098, %v1097
    %v1111 = vpack.c.b16 %v1100, %v1099
    %v1112 = vpack.c.b16 %v1102, %v1101
    %v1113 = vpack.c.b16 %v1104, %v1103
    %v1114 = vpack.c.b16 %v1106, %v1105
    %1123 = vmatprep.subr.bf16.mxu0 0
    %1124 = vmatpush1.bf16.msra.mxu0 %v1114
    %1125 = vmatprep.subr.bf16.mxu0 0
    %1126 = vmatpush1.bf16.msra.mxu0 %v1113
    %1127 = vmatprep.subr.bf16.mxu0 0
    %1128 = vmatpush1.bf16.msra.mxu0 %v1112
    %1129 = vmatprep.subr.bf16.mxu0 0
    %1130 = vmatpush1.bf16.msra.mxu0 %v1111
    %1131 = vmatprep.subr.bf16.mxu0 0
    %1132 = vmatpush1.bf16.msra.mxu0 %v1110
    %1133 = vmatprep.subr.bf16.mxu0 0
    %1134 = vmatpush1.bf16.msra.mxu0 %v1109
    %1135 = vmatprep.subr.bf16.mxu0 0
    %1136 = vmatpush1.bf16.msra.mxu0 %v1108
    %1137 = vmatprep.subr.bf16.mxu0 0
    %1138 = vmatpush1.bf16.msra.mxu0 %v1107
    %1139 = vmatprep.subr.bf16.mxu0 0
    %1140 = vmatpush2.bf16.msra.mxu0 0
    %1141 = vmatprep.subr.bf16.mxu0 0
    %1142 = vmatpush2.bf16.msra.mxu0 0
    %1143 = vmatprep.subr.bf16.mxu0 0
    %1144 = vmatpush2.bf16.msra.mxu0 0
    %1145 = vmatprep.subr.bf16.mxu0 0
    %1146 = vmatpush2.bf16.msra.mxu0 0
    %1147 = vmatprep.subr.bf16.mxu0 0
    %1148 = vmatpush2.bf16.msra.mxu0 0
    %1149 = vmatprep.subr.bf16.mxu0 0
    %1150 = vmatpush2.bf16.msra.mxu0 0
    %1151 = vmatprep.subr.bf16.mxu0 0
    %1152 = vmatpush2.bf16.msra.mxu0 0
    %1153 = vmatprep.subr.bf16.mxu0 0
    %1154 = vmatpush2.bf16.msra.mxu0 0
    %1155 = vmatprep.mubr.bf16.mxu0 0
    %1156 = vmatmul.mubr.bf16.gmra.mxu0 %v1054
    %v1157 = vpop.f32.mrf.mxu0
    %v1158 = vadd.f32 0.0, %v1157
    %v1159 = vpop.f32.mrf.mxu0
    %v1160 = vpop.f32.mrf.mxu0
    %v1161 = vadd.f32 0.0, %v1160
    %v1162 = vpop.f32.mrf.mxu0
    %1163 = vmatprep.mubr.bf16.mxu0 0
    %1164 = vmatmul.mubr.bf16.gmra.mxu0 %v1055
    %v1165 = vpop.f32.mrf.mxu0
    %v1166 = vadd.f32 0.0, %v1165
    %v1167 = vpop.f32.mrf.mxu0
    %v1168 = vpop.f32.mrf.mxu0
    %v1169 = vadd.f32 0.0, %v1168
    %v1170 = vpop.f32.mrf.mxu0
    %1171 = vmatprep.mubr.bf16.mxu0 0
    %1172 = vmatmul.mubr.bf16.gmra.mxu0 %v1056
    %v1173 = vpop.f32.mrf.mxu0
    %v1174 = vadd.f32 0.0, %v1173
    %v1175 = vpop.f32.mrf.mxu0
    %v1176 = vpop.f32.mrf.mxu0
    %v1177 = vadd.f32 0.0, %v1176
    %v1178 = vpop.f32.mrf.mxu0
    %1179 = vmatprep.mubr.bf16.mxu0 0
    %1180 = vmatmul.mubr.bf16.gmra.mxu0 %v1057
    %v1181 = vpop.f32.mrf.mxu0
    %v1182 = vadd.f32 0.0, %v1181
    %v1183 = vpop.f32.mrf.mxu0
    %v1184 = vpop.f32.mrf.mxu0
    %v1185 = vadd.f32 0.0, %v1184
    %v1186 = vpop.f32.mrf.mxu0
    %1187 = vdwg.mxu0
    %v1188 = vpack.c.bf16 %v1161, %v1158
    %v1189 = vpack.c.bf16 %v1169, %v1166
    %v1190 = vpack.c.bf16 %v1177, %v1174
    %v1191 = vpack.c.bf16 %v1185, %v1182
    %s1192 = scalar_lea.vmem %s7, 2
    %v1193 = vld [vmem:[%s1192] sm:$0x1]
    %v1195 = vlaneseq
    %v1196 = vshrl.u32 %v1195, 7
    %v1197 = vsub.s32 0, %v1196
    %v1198 = vrot.slane %v1193, %v1197
    %1200 = vmatprep.subr.bf16.mxu0 0
    %1201 = vmatpush1.bf16.msra.mxu0 0
    %1202 = vmatprep.subr.bf16.mxu0 0
    %1203 = vmatpush1.bf16.msra.mxu0 0
    %1204 = vmatprep.subr.bf16.mxu0 0
    %1205 = vmatpush1.bf16.msra.mxu0 0
    %1206 = vmatprep.subr.bf16.mxu0 0
    %1207 = vmatpush1.bf16.msra.mxu0 0
    %1208 = vmatprep.subr.bf16.mxu0 0
    %1209 = vmatpush1.bf16.msra.mxu0 %v1191
    %1210 = vmatprep.subr.bf16.mxu0 0
    %1211 = vmatpush1.bf16.msra.mxu0 %v1190
    %1212 = vmatprep.subr.bf16.mxu0 0
    %1213 = vmatpush1.bf16.msra.mxu0 %v1189
    %1214 = vmatprep.subr.bf16.mxu0 0
    %1215 = vmatpush1.bf16.msra.mxu0 %v1188
    %1216 = vmatprep.subr.bf16.mxu0 0
    %1217 = vmatpush2.bf16.msra.mxu0 0
    %1218 = vmatprep.subr.bf16.mxu0 0
    %1219 = vmatpush2.bf16.msra.mxu0 0
    %1220 = vmatprep.subr.bf16.mxu0 0
    %1221 = vmatpush2.bf16.msra.mxu0 0
    %1222 = vmatprep.subr.bf16.mxu0 0
    %1223 = vmatpush2.bf16.msra.mxu0 0
    %1224 = vmatprep.subr.bf16.mxu0 0
    %1225 = vmatpush2.bf16.msra.mxu0 0
    %1226 = vmatprep.subr.bf16.mxu0 0
    %1227 = vmatpush2.bf16.msra.mxu0 0
    %1228 = vmatprep.subr.bf16.mxu0 0
    %1229 = vmatpush2.bf16.msra.mxu0 0
    %1230 = vmatprep.subr.bf16.mxu0 0
    %1231 = vmatpush2.bf16.msra.mxu0 0
    %1232 = vmatprep.mubr.bf16.mxu0 0
    %1233 = vmatmul.mubr.bf16.gmra.mxu0 %v563
    %v1234 = vpop.f32.mrf.mxu0
    %v1235 = vadd.f32 %v1198, %v1234
    %v1236 = vpop.f32.mrf.mxu0
    %v1237 = vpop.f32.mrf.mxu0
    %v1238 = vadd.f32 %v1198, %v1237
    %v1239 = vpop.f32.mrf.mxu0
    %1240 = vmatprep.mubr.bf16.mxu0 0
    %1241 = vmatmul.mubr.bf16.gmra.mxu0 %v566
    %v1242 = vpop.f32.mrf.mxu0
    %v1243 = vadd.f32 %v1198, %v1242
    %v1244 = vpop.f32.mrf.mxu0
    %v1245 = vpop.f32.mrf.mxu0
    %v1246 = vadd.f32 %v1198, %v1245
    %v1247 = vpop.f32.mrf.mxu0
    %1248 = vmatprep.mubr.bf16.mxu0 0
    %1249 = vmatmul.mubr.bf16.gmra.mxu0 %v569
    %v1250 = vpop.f32.mrf.mxu0
    %v1251 = vadd.f32 %v1198, %v1250
    %v1252 = vpop.f32.mrf.mxu0
    %v1253 = vpop.f32.mrf.mxu0
    %v1254 = vadd.f32 %v1198, %v1253
    %v1255 = vpop.f32.mrf.mxu0
    %1256 = vmatprep.mubr.bf16.mxu0 0
    %1257 = vmatmul.mubr.bf16.gmra.mxu0 %v572
    %v1258 = vpop.f32.mrf.mxu0
    %v1259 = vadd.f32 %v1198, %v1258
    %v1260 = vpop.f32.mrf.mxu0
    %v1261 = vpop.f32.mrf.mxu0
    %v1262 = vadd.f32 %v1198, %v1261
    %v1263 = vpop.f32.mrf.mxu0
    %1264 = vdwg.mxu0
    %v1265 = vmul.f32 %v1235, 0.01
    %v1266 = vmul.f32 %v1238, 0.01
    %v1267 = vmul.f32 %v1243, 0.01
    %v1268 = vmul.f32 %v1246, 0.01
    %v1269 = vmul.f32 %v1251, 0.01
    %v1270 = vmul.f32 %v1254, 0.01
    %v1271 = vmul.f32 %v1259, 0.01
    %v1272 = vmul.f32 %v1262, 0.01
    %v1273 = vmax.f32 %v1235, %v1265
    %v1274 = vmax.f32 %v1238, %v1266
    %v1275 = vmax.f32 %v1243, %v1267
    %v1276 = vmax.f32 %v1246, %v1268
    %v1277 = vmax.f32 %v1251, %v1269
    %v1278 = vmax.f32 %v1254, %v1270
    %v1279 = vmax.f32 %v1259, %v1271
    %v1280 = vmax.f32 %v1262, %v1272
    %v1281 = vld [vmem:[%s9] sm:$0xff]
    %v1283 = vsel %vm561, %v1281, 0
    %1285 = vmatprep.subr.mxu0 0.0
    %1286 = vmatpush1.msra.mxu0 0.0
    %1287 = vmatprep.subr.mxu0 0.0
    %1288 = vmatpush1.msra.mxu0 0.0
    %1289 = vmatprep.subr.mxu0 0.0
    %1290 = vmatpush1.msra.mxu0 0.0
    %1291 = vmatprep.subr.mxu0 0.0
    %1292 = vmatpush1.msra.mxu0 0.0
    %1293 = vmatprep.subr.mxu0 0.0
    %1294 = vmatpush1.msra.mxu0 0.0
    %1295 = vmatprep.subr.mxu0 0.0
    %1296 = vmatpush1.msra.mxu0 0.0
    %1297 = vmatprep.subr.mxu0 0.0
    %1298 = vmatpush1.msra.mxu0 0.0
    %1299 = vmatprep.subr.mxu0 0.0
    %1300 = vmatpush1.msra.mxu0 0.0
    %1301 = vmatprep.subr.mxu0 0.0
    %1302 = vmatpush1.msra.mxu0 %v1280
    %1303 = vmatprep.subr.mxu0 0.0
    %1304 = vmatpush1.msra.mxu0 %v1279
    %1305 = vmatprep.subr.mxu0 0.0
    %1306 = vmatpush1.msra.mxu0 %v1278
    %1307 = vmatprep.subr.mxu0 0.0
    %1308 = vmatpush1.msra.mxu0 %v1277
    %1309 = vmatprep.subr.mxu0 0.0
    %1310 = vmatpush1.msra.mxu0 %v1276
    %1311 = vmatprep.subr.mxu0 0.0
    %1312 = vmatpush1.msra.mxu0 %v1275
    %1313 = vmatprep.subr.mxu0 0.0
    %1314 = vmatpush1.msra.mxu0 %v1274
    %1315 = vmatprep.subr.mxu0 0.0
    %1316 = vmatpush1.msra.mxu0 %v1273
    %1317 = vmatprep.subr.mxu0 0.0
    %1318 = vmatpush2.msra.mxu0 0.0
    %1319 = vmatprep.subr.mxu0 0.0
    %1320 = vmatpush2.msra.mxu0 0.0
    %1321 = vmatprep.subr.mxu0 0.0
    %1322 = vmatpush2.msra.mxu0 0.0
    %1323 = vmatprep.subr.mxu0 0.0
    %1324 = vmatpush2.msra.mxu0 0.0
    %1325 = vmatprep.subr.mxu0 0.0
    %1326 = vmatpush2.msra.mxu0 0.0
    %1327 = vmatprep.subr.mxu0 0.0
    %1328 = vmatpush2.msra.mxu0 0.0
    %1329 = vmatprep.subr.mxu0 0.0
    %1330 = vmatpush2.msra.mxu0 0.0
    %1331 = vmatprep.subr.mxu0 0.0
    %1332 = vmatpush2.msra.mxu0 0.0
    %1333 = vmatprep.subr.mxu0 0.0
    %1334 = vmatpush2.msra.mxu0 0.0
    %1335 = vmatprep.subr.mxu0 0.0
    %1336 = vmatpush2.msra.mxu0 0.0
    %1337 = vmatprep.subr.mxu0 0.0
    %1338 = vmatpush2.msra.mxu0 0.0
    %1339 = vmatprep.subr.mxu0 0.0
    %1340 = vmatpush2.msra.mxu0 0.0
    %1341 = vmatprep.subr.mxu0 0.0
    %1342 = vmatpush2.msra.mxu0 0.0
    %1343 = vmatprep.subr.mxu0 0.0
    %1344 = vmatpush2.msra.mxu0 0.0
    %1345 = vmatprep.subr.mxu0 0.0
    %1346 = vmatpush2.msra.mxu0 0.0
    %1347 = vmatprep.subr.mxu0 0.0
    %1348 = vmatpush2.msra.mxu0 0.0
    %1349 = vmatprep.mubr.f32.mxu0 0.0
    %1350 = vmatmul.mubr.f32.gmra.mxu0 %v1283
    %v1351 = vpop.f32.mrf.mxu0
    %v1352 = vadd.f32 0.0, %v1351
    %v1353 = vpop.f32.mrf.mxu0
    %1354 = vdwg.mxu0
    %1355 = vst [vmem:[%s10] sm:$0xff] %v1352
    // Predicated region
    $region50: #{gcn_forward.1} parent=1 // pred_check
      _
    $region51: #{gcn_forward.1} parent=1 // pred_check_branch
      %1357 = sbr.rel (0) target = $region53
    $region52: #{gcn_forward.1} parent=1 // pred_region
      _
    $region53: #{gcn_forward.1} parent=1 // pred_fallthru
      _
    // Predicated region
    $region54: #{gcn_forward.1} parent=1 // pred_check
      _
    $region55: #{gcn_forward.1} parent=1 // pred_check_branch
      %1359 = sbr.rel (0) target = $region57
    $region56: #{gcn_forward.1} parent=1 // pred_region
      _
    $region57: #{gcn_forward.1} parent=1 // pred_fallthru
      _
    %1360 = vsyncpa [#allocation3], 1
    %1361 = vsyncpa [#allocation5], 1

</llo_original>
